<compile_context>
chip_gen: v7x
topology: tpu7x:2x2x1
jax: 0.10.0
libtpu: 0.0.40
codegen_flags: <defaults>
</compile_context>

<pallas_src>
import math
from functools import partial

import jax
import jax.numpy as jnp
from jax.experimental import pallas as pl
from jax.experimental.pallas import tpu as pltpu


def _flash_sdpa_kernel(info_ref, pos_ref, q_ref, k_ref, v_ref, o_ref,
                       m_sc, l_sc, acc_sc, qs_sc, *,
                       scale, kv_tile, n_rep, q_rows, kv_len, mxu_dtype,
                       recip_approx):
    """One (batch, kv-head-group) tile, streaming over KV tiles (grid axis 2).

    info_ref : SMEM int32[2]  [0]=#KV tiles actually needed, [1]=min query pos
    pos_ref  : [M, 1] int32   absolute query position per folded row (M = n_rep*S)
    q_ref    : [M, D]         folded query tile (all heads of this KV group)
    k_ref    : [Tt, D]        current KV tile
    v_ref    : [Tt, D]
    o_ref    : [S, n_rep*D]   lane-dense output slab
    m/l/acc  : f32 online-softmax state (scratch, persistent across KV steps)
    qs_sc    : [M, D]         pre-scaled q in the MXU operand dtype
    """
    kv = pl.program_id(2)
    needed = info_ref[0]
    min_pos = info_ref[1]

    @pl.when(kv < needed)
    def _compute():
        @pl.when(kv == 0)
        def _init():
            # Finite init (not -inf): if a row's tile is ever fully masked,
            # alpha = exp(m_prev - m_new) stays well-defined (no NaN poisoning).
            m_sc[...] = jnp.full(m_sc.shape, -1e30, jnp.float32)
            l_sc[...] = jnp.zeros(l_sc.shape, jnp.float32)
            acc_sc[...] = jnp.zeros(acc_sc.shape, jnp.float32)
            # Scale q once per (b, group) instead of once per KV step, and keep
            # it in the MXU operand dtype.
            qs_sc[...] = (q_ref[...].astype(jnp.float32) * scale).astype(mxu_dtype)

        k = k_ref[...].astype(mxu_dtype)                     # [Tt, D]
        v = v_ref[...].astype(mxu_dtype)                     # [Tt, D]

        # QK^T on the MXU with f32 accumulation.
        s = jax.lax.dot_general(qs_sc[...], k, (((1,), (1,)), ((), ())),
                                preferred_element_type=jnp.float32)   # [M, Tt]

        def _update(s_tile):
            m_prev = m_sc[...]                               # [M, 1]
            m_new = jnp.maximum(m_prev, jnp.max(s_tile, axis=-1, keepdims=True))
            alpha = jnp.exp(m_prev - m_new)                  # [M, 1]
            p = jnp.exp(s_tile - m_new)                      # [M, Tt] f32
            l_sc[...] = alpha * l_sc[...] + jnp.sum(p, axis=-1, keepdims=True)
            acc_sc[...] = alpha * acc_sc[...] + jax.lax.dot_general(
                p.astype(mxu_dtype), v, (((1,), (0,)), ((), ())),
                preferred_element_type=jnp.float32)          # [M, D]
            m_sc[...] = m_new

        # Only the tile that contains the causal boundary (or a ragged last
        # tile) needs the iota/cmp/select mask work; interior tiles skip it.
        tile_last = kv * kv_tile + (kv_tile - 1)
        needs_mask = tile_last > min_pos
        if kv_len % kv_tile != 0:
            needs_mask = jnp.logical_or(needs_mask, tile_last >= kv_len)

        @pl.when(needs_mask)
        def _boundary_tile():
            key_pos = kv * kv_tile + jax.lax.broadcasted_iota(jnp.int32, s.shape, 1)
            keep = key_pos <= pos_ref[...]
            if kv_len % kv_tile != 0:
                keep = jnp.logical_and(keep, key_pos < kv_len)  # ragged last tile
            _update(jnp.where(keep, s, -jnp.inf))

        @pl.when(jnp.logical_not(needs_mask))
        def _interior_tile():
            _update(s)

        @pl.when(kv == needed - 1)
        def _finalize():
            inv_l = pl.reciprocal(l_sc[...], approx=recip_approx)
            out = acc_sc[...] * inv_l                        # [M, D] f32
            # Un-fold heads into the lane-dense [S, n_rep*D] output slab:
            # row r*S + s of `out` is head (g*n_rep + r), query s.
            # (Epilogue-only; a pltpu.einshape '(r s) d -> s (r d)' would also do.)
            parts = [out[r * q_rows:(r + 1) * q_rows, :] for r in range(n_rep)]
            o_ref[...] = jnp.concatenate(parts, axis=-1).astype(o_ref.dtype)


def sdpa_pallas(q, k, v, input_pos, n_rep, *, kv_tile=None, kv_buffers=None,
                mxu_dtype=jnp.bfloat16, vmem_limit_bytes=None):
    """q: [B,H,S,D], k/v: [B,Hkv,T,D], input_pos: [S] int32 -> [B, S, H*D]."""
    B, H, S, D = q.shape
    Bk, Hkv, T, Dk = k.shape
    assert (Bk, Dk) == (B, D) and v.shape == k.shape
    assert Hkv * n_rep == H
    assert input_pos.ndim == 1 and input_pos.shape[0] == S
    M = n_rep * S
    group_dim = n_rep * D
    dim = H * D

    # Each (b, kv-group) step writes a [S, n_rep*D] block of the [B, S, H*D]
    # output; keep it lane-aligned so stores are full-width.
    assert group_dim % 128 == 0 or Hkv == 1, (
        f"n_rep*head_dim must be a multiple of 128; got n_rep={n_rep}, head_dim={D}")
    # TODO(synk): fall back to a [B, Hkv, n_rep*S, D] output + XLA transpose when
    # n_rep*head_dim is not lane-aligned.

    if kv_tile is None:
        # Size the KV tile by vreg pressure, not VMEM: the live [M, kv_tile] f32
        # score & prob tiles cost ~2*(M/8)*(kv_tile/128) vregs, so keep
        # kv_tile <= ~16384/M (decode M<=32 -> 512-2048).  Same rule on
        # v5e/v6e/v7x; VMEM is never the binding constraint at these shapes.
        cap = (16384 // max(M, 8)) // 128 * 128
        kv_tile = int(max(128, min(2048, cap)))
    kv_tile = int(min(kv_tile, T))
    if kv_tile % 8 != 0:
        kv_tile = T  # tiny caches: a single full-extent block is always legal
    num_kv = pl.cdiv(T, kv_tile)  # ragged last tile is masked in-kernel

    scale = 1.0 / math.sqrt(D)
    recip_approx = jnp.dtype(mxu_dtype) != jnp.dtype(jnp.float32)

    # GQA repeat_interleave(n_rep, dim=1) with zero data movement: the n_rep
    # query heads of one KV group are contiguous, so this reshape is a free view.
    q4 = q.reshape(B, Hkv, M, D)
    # Absolute query position per folded row (row = r*S + s -> input_pos[s]).
    pos_rows = jnp.tile(input_pos.astype(jnp.int32), n_rep).reshape(M, 1)

    # Scalar-prefetch info: causal trim of the KV loop + boundary-tile test.
    max_pos = jnp.max(input_pos).astype(jnp.int32)
    needed = jnp.maximum((max_pos + kv_tile) // kv_tile, 1).astype(jnp.int32)
    min_pos = jnp.min(input_pos).astype(jnp.int32)
    info = jnp.stack([needed, min_pos]).astype(jnp.int32)

    kernel = partial(_flash_sdpa_kernel, scale=scale, kv_tile=kv_tile,
                     n_rep=n_rep, q_rows=S, kv_len=T, mxu_dtype=mxu_dtype,
                     recip_approx=bool(recip_approx))

    def kv_index_map(b, g, t, info):
        # Clamp to the last needed tile: skipped tiles revisit the same block,
        # so Pallas issues no fresh K/V DMA for causally-masked cache tiles.
        return (b, g, jnp.minimum(t, info[0] - 1), 0)

    # Optional deeper K/V buffering (useful on v7x where per-tile DMA time is
    # short relative to issue latency); default 2-deep.
    kv_spec_kwargs = {}
    if kv_buffers is not None and kv_buffers != 2:
        kv_spec_kwargs["pipeline_mode"] = pl.Buffered(kv_buffers)

    cp = dict(dimension_semantics=("parallel", "parallel", "arbitrary"))
    if vmem_limit_bytes is not None:
        cp["vmem_limit_bytes"] = vmem_limit_bytes
    # TODO(synk): on v7x with B*Hkv == 1 both TensorCores can only be used by
    # core-splitting the KV axis (two partial m/l/acc sets + a combine step);
    # not implemented here.

    return pl.pallas_call(
        kernel,
        out_shape=jax.ShapeDtypeStruct((B, S, dim), q.dtype),
        grid_spec=pltpu.PrefetchScalarGridSpec(
            num_scalar_prefetch=1,
            grid=(B, Hkv, num_kv),
            in_specs=[
                # per-row query positions (shared by every grid step)
                pl.BlockSpec((M, 1), lambda b, g, t, info: (0, 0)),
                # folded q tile for (batch b, kv group g)
                pl.BlockSpec((None, None, M, D), lambda b, g, t, info: (b, g, 0, 0)),
                # K / V tiles streamed along the context axis (causally clamped)
                pl.BlockSpec((None, None, kv_tile, D), kv_index_map, **kv_spec_kwargs),
                pl.BlockSpec((None, None, kv_tile, D), kv_index_map, **kv_spec_kwargs),
            ],
            # lane-dense slab of the final [B, S, H*D] output (resident over kv)
            out_specs=pl.BlockSpec((None, S, group_dim), lambda b, g, t, info: (b, 0, g)),
            scratch_shapes=[
                pltpu.VMEM((M, 1), jnp.float32),   # running max  m
                pltpu.VMEM((M, 1), jnp.float32),   # running sum  l
                pltpu.VMEM((M, D), jnp.float32),   # output accumulator
                pltpu.VMEM((M, D), mxu_dtype),     # pre-scaled q (MXU operand)
            ],
        ),
        compiler_params=pltpu.CompilerParams(**cp),
    )(info, pos_rows, q4, k, v)


class SDPA:
    """JAX/Pallas port of examples/models/llama/attention.py::SDPA (static path)."""

    def __init__(self, dim, head_dim, n_rep, max_context_len,
                 enable_dynamic_shape=False):
        self.dim = dim
        self.head_dim = head_dim
        self.n_rep = n_rep
        self.max_context_len = max_context_len
        self.enable_dynamic_shape = enable_dynamic_shape
        # TODO(synk): enable_dynamic_shape=True path (data-dependent mask.narrow)
        # not implemented; only the static-shape path is supported.

    def __call__(self, input_pos, q, k, v, bsz, seqlen, mask=None,
                 kv_tile=None, mxu_dtype=jnp.bfloat16):
        # `mask` (the module's registered [T, T] causal tril) is accepted for
        # interface parity, but the identical causal mask is rebuilt in-kernel
        # from input_pos, so no [S, T] mask is ever materialized or DMA'd.
        del mask, bsz, seqlen
        y = sdpa_pallas(q, k, v, input_pos, self.n_rep,
                        kv_tile=kv_tile, mxu_dtype=mxu_dtype)
        return y  # already [bsz, seqlen, dim] == y.transpose(1,2).view(...)


def sdpa_reference(input_pos, q, k, v, bsz, seqlen, mask_bool, n_rep, dim):
    """Pure-JAX reference mirroring the PyTorch forward (static-shape path)."""
    attn_mask = mask_bool[input_pos]                     # [S, T] bool (True = keep)
    k = jnp.repeat(k, n_rep, axis=1)                     # repeat_interleave dim=1
    v = jnp.repeat(v, n_rep, axis=1)
    scale = 1.0 / math.sqrt(q.shape[-1])
    s = jnp.einsum("bhsd,bhtd->bhst", q, k) * scale
    s = jnp.where(attn_mask[None, None], s, -jnp.inf)
    p = jax.nn.softmax(s, axis=-1)
    y = jnp.einsum("bhst,bhtd->bhsd", p, v)
    return y.transpose(0, 2, 1, 3).reshape(bsz, seqlen, dim)


if __name__ == "__main__":
    # Small shapes consistent with the module (GQA, KV cache longer than seqlen).
    bsz = 2
    n_kv_heads = 2
    n_rep = 4
    n_heads = n_kv_heads * n_rep          # 8
    head_dim = 32                         # n_rep*head_dim == 128 (lane-dense out)
    dim = n_heads * head_dim              # 256
    seqlen = 8
    max_context_len = 256                 # KV cache length T
    kv_tile = 128                         # 2 KV tiles -> exercises tile trim/skip

    key = jax.random.PRNGKey(0)
    kq, kk, kv_ = jax.random.split(key, 3)
    q = jax.random.normal(kq, (bsz, n_heads, seqlen, head_dim), dtype=jnp.float32)
    k = jax.random.normal(kk, (bsz, n_kv_heads, max_context_len, head_dim),
                          dtype=jnp.float32)
    v = jax.random.normal(kv_, (bsz, n_kv_heads, max_context_len, head_dim),
                          dtype=jnp.float32)

    # Boolean causal tril, exactly like the module's registered `mask` buffer.
    mask = jnp.tril(jnp.ones((max_context_len, max_context_len), dtype=bool))

    sdpa = SDPA(dim=dim, head_dim=head_dim, n_rep=n_rep,
                max_context_len=max_context_len, enable_dynamic_shape=False)

    # --- Case 1: positions 100..107 -> only KV tile 0 needed, tile 1 skipped
    #     (causal trim + masked boundary path).  f32 MXU for a tight check.
    pos1 = jnp.arange(100, 100 + seqlen, dtype=jnp.int32)
    out1 = jax.block_until_ready(
        sdpa(pos1, q, k, v, bsz, seqlen, mask, kv_tile=kv_tile,
             mxu_dtype=jnp.float32))
    ref1 = sdpa_reference(pos1, q, k, v, bsz, seqlen, mask, n_rep, dim)
    assert out1.shape == (bsz, seqlen, dim)
    err1 = float(jnp.max(jnp.abs(out1 - ref1)))
    assert jnp.allclose(out1, ref1, atol=3e-3, rtol=3e-3), (
        f"f32-MXU / tile-skip path mismatch, max abs err {err1}")

    # --- Case 2: positions 200..207 -> tile 0 interior (mask-free path),
    #     tile 1 is the causal boundary (masked path).  f32 MXU, tight check.
    pos2 = jnp.arange(200, 200 + seqlen, dtype=jnp.int32)
    out2 = jax.block_until_ready(
        sdpa(pos2, q, k, v, bsz, seqlen, mask, kv_tile=kv_tile,
             mxu_dtype=jnp.float32))
    ref2 = sdpa_reference(pos2, q, k, v, bsz, seqlen, mask, n_rep, dim)
    err2 = float(jnp.max(jnp.abs(out2 - ref2)))
    assert jnp.allclose(out2, ref2, atol=3e-3, rtol=3e-3), (
        f"f32-MXU / interior+boundary path mismatch, max abs err {err2}")

    # --- Case 3: same positions, default bf16 MXU operands (the optimized
    #     production path); tolerance reflects bf16 matmul rounding.
    out3 = jax.block_until_ready(
        sdpa(pos2, q, k, v, bsz, seqlen, mask, kv_tile=kv_tile))
    err3 = float(jnp.max(jnp.abs(out3 - ref2)))
    assert jnp.allclose(out3, ref2, atol=5e-2, rtol=5e-2), (
        f"bf16-MXU path mismatch, max abs err {err3}")

    print("KERNEL_OK")
</pallas_src>

<mosaic_0001>
module attributes {stable_mosaic.version = 11 : i64} {
  func.func @_flash_sdpa_kernel(%arg0: i32, %arg1: i32, %arg2: i32, %arg3: memref<2xi32, #tpu.memory_space<smem>>, %arg4: memref<32x1xi32, #tpu.memory_space<vmem>>, %arg5: memref<1x1x32x32xf32, #tpu.memory_space<vmem>>, %arg6: memref<1x1x128x32xf32, #tpu.memory_space<vmem>>, %arg7: memref<1x1x128x32xf32, #tpu.memory_space<vmem>>, %arg8: memref<1x8x128xf32, #tpu.memory_space<vmem>>, %arg9: memref<32x1xf32, #tpu.memory_space<vmem>>, %arg10: memref<32x1xf32, #tpu.memory_space<vmem>>, %arg11: memref<32x32xf32, #tpu.memory_space<vmem>>, %arg12: memref<32x32xf32, #tpu.memory_space<vmem>>) attributes {dimension_semantics = [#tpu.dimension_semantics<parallel>, #tpu.dimension_semantics<parallel>, #tpu.dimension_semantics<arbitrary>], iteration_bounds = array<i64: 2, 2, 2>, scalar_prefetch = 1 : i64, scratch_operands = 4 : i64, tpu.core_type = #tpu.core_type<tc>, window_params = [{pipeline_mode = #tpu.pipeline_mode<synchronous>, transform_indices = @transform_0, window_bounds = array<i64: 32, 1>}, {transform_indices = @transform_1, window_bounds = array<i64: 1, 1, 32, 32>}, {transform_indices = @transform_2, window_bounds = array<i64: 1, 1, 128, 32>}, {transform_indices = @transform_3, window_bounds = array<i64: 1, 1, 128, 32>}, {transform_indices = @transform_4, window_bounds = array<i64: 1, 8, 128>}]} {
    %c0 = arith.constant 0 : index
    %0 = memref.load %arg3[%c0] : memref<2xi32, #tpu.memory_space<smem>>
    %c1 = arith.constant 1 : index
    %1 = memref.load %arg3[%c1] : memref<2xi32, #tpu.memory_space<smem>>
    %2 = arith.cmpi slt, %arg2, %0 : i32
    %3 = arith.extui %2 : i1 to i32
    %c0_i32 = arith.constant 0 : i32
    %4 = arith.cmpi ne, %3, %c0_i32 : i32
    scf.if %4 {
      %c0_i32_0 = arith.constant 0 : i32
      %5 = arith.cmpi eq, %arg2, %c0_i32_0 : i32
      %6 = arith.extui %5 : i1 to i32
      %c0_i32_1 = arith.constant 0 : i32
      %7 = arith.cmpi ne, %6, %c0_i32_1 : i32
      scf.if %7 {
        %cst_15 = arith.constant -1.000000e+30 : f32
        %26 = vector.broadcast %cst_15 : f32 to vector<32x1xf32>
        %c0_16 = arith.constant 0 : index
        %c0_17 = arith.constant 0 : index
        %27 = vector.load %arg9[%c0_16, %c0_17] : memref<32x1xf32, #tpu.memory_space<vmem>>, vector<32x1xf32>
        tpu.vector_store %arg9[%c0_16, %c0_17], %26 {strides = array<i32>} : memref<32x1xf32, #tpu.memory_space<vmem>>, vector<32x1xf32>,
        %cst_18 = arith.constant 0.000000e+00 : f32
        %28 = vector.broadcast %cst_18 : f32 to vector<32x1xf32>
        %c0_19 = arith.constant 0 : index
        %c0_20 = arith.constant 0 : index
        %29 = vector.load %arg10[%c0_19, %c0_20] : memref<32x1xf32, #tpu.memory_space<vmem>>, vector<32x1xf32>
        tpu.vector_store %arg10[%c0_19, %c0_20], %28 {strides = array<i32>} : memref<32x1xf32, #tpu.memory_space<vmem>>, vector<32x1xf32>,
        %cst_21 = arith.constant 0.000000e+00 : f32
        %30 = vector.broadcast %cst_21 : f32 to vector<32x32xf32>
        %c0_22 = arith.constant 0 : index
        %c0_23 = arith.constant 0 : index
        %31 = vector.load %arg11[%c0_22, %c0_23] : memref<32x32xf32, #tpu.memory_space<vmem>>, vector<32x32xf32>
        tpu.vector_store %arg11[%c0_22, %c0_23], %30 {strides = array<i32>} : memref<32x32xf32, #tpu.memory_space<vmem>>, vector<32x32xf32>,
        %c0_24 = arith.constant 0 : index
        %c0_25 = arith.constant 0 : index
        %c0_26 = arith.constant 0 : index
        %c0_27 = arith.constant 0 : index
        %32 = vector.load %arg5[%c0_24, %c0_25, %c0_26, %c0_27] : memref<1x1x32x32xf32, #tpu.memory_space<vmem>>, vector<1x1x32x32xf32>
        %33 = vector.shape_cast %32 : vector<1x1x32x32xf32> to vector<32x32xf32>
        %cst_28 = arith.constant 0.176776692 : f32
        %34 = vector.broadcast %cst_28 : f32 to vector<32x32xf32>
        %35 = arith.mulf %33, %34 : vector<32x32xf32>
        %c0_29 = arith.constant 0 : index
        %c0_30 = arith.constant 0 : index
        %36 = vector.load %arg12[%c0_29, %c0_30] : memref<32x32xf32, #tpu.memory_space<vmem>>, vector<32x32xf32>
        tpu.vector_store %arg12[%c0_29, %c0_30], %35 {strides = array<i32>} : memref<32x32xf32, #tpu.memory_space<vmem>>, vector<32x32xf32>,
      } else {
      }
      %c0_2 = arith.constant 0 : index
      %c0_3 = arith.constant 0 : index
      %c0_4 = arith.constant 0 : index
      %c0_5 = arith.constant 0 : index
      %8 = vector.load %arg6[%c0_2, %c0_3, %c0_4, %c0_5] : memref<1x1x128x32xf32, #tpu.memory_space<vmem>>, vector<1x1x128x32xf32>
      %9 = vector.shape_cast %8 : vector<1x1x128x32xf32> to vector<128x32xf32>
      %c0_6 = arith.constant 0 : index
      %c0_7 = arith.constant 0 : index
      %c0_8 = arith.constant 0 : index
      %c0_9 = arith.constant 0 : index
      %10 = vector.load %arg7[%c0_6, %c0_7, %c0_8, %c0_9] : memref<1x1x128x32xf32, #tpu.memory_space<vmem>>, vector<1x1x128x32xf32>
      %11 = vector.shape_cast %10 : vector<1x1x128x32xf32> to vector<128x32xf32>
      %c0_10 = arith.constant 0 : index
      %c0_11 = arith.constant 0 : index
      %12 = vector.load %arg12[%c0_10, %c0_11] : memref<32x32xf32, #tpu.memory_space<vmem>>, vector<32x32xf32>
      %cst = arith.constant dense<0.000000e+00> : vector<32x128xf32>
      %13 = tpu.matmul %12, %9, %cst {dimension_numbers = #tpu.dot_dimension_numbers<[1], [1], [0], [0], [0, 0, 1, 0], [], []>} : vector<32x32xf32>, vector<128x32xf32>, vector<32x128xf32> -> vector<32x128xf32>
      %c128_i32 = arith.constant 128 : i32
      %14 = arith.muli %arg2, %c128_i32 : i32
      %c127_i32 = arith.constant 127 : i32
      %15 = arith.addi %14, %c127_i32 : i32
      %16 = arith.cmpi sgt, %15, %1 : i32
      %17 = arith.extui %16 : i1 to i32
      %c0_i32_12 = arith.constant 0 : i32
      %18 = arith.cmpi ne, %17, %c0_i32_12 : i32
      scf.if %18 {
        %c128_i32_15 = arith.constant 128 : i32
        %26 = arith.muli %arg2, %c128_i32_15 : i32
        %27 = tpu.iota {dimensions = array<i32: 1>} : vector<32x128xi32>
        %28 = vector.broadcast %26 : i32 to vector<32x128xi32>
        %29 = arith.addi %28, %27 : vector<32x128xi32>
        %c0_16 = arith.constant 0 : index
        %c0_17 = arith.constant 0 : index
        %30 = vector.load %arg4[%c0_16, %c0_17] : memref<32x1xi32, #tpu.memory_space<vmem>>, vector<32x1xi32>
        %31 = vector.broadcast %30 : vector<32x1xi32> to vector<32x128xi32>
        %32 = arith.cmpi sle, %29, %31 : vector<32x128xi32>
        %cst_18 = arith.constant 0xFF800000 : f32
        %33 = vector.broadcast %cst_18 : f32 to vector<32x128xf32>
        %34 = arith.select %32, %13, %33 : vector<32x128xi1>, vector<32x128xf32>
        %c0_19 = arith.constant 0 : index
        %c0_20 = arith.constant 0 : index
        %35 = vector.load %arg9[%c0_19, %c0_20] : memref<32x1xf32, #tpu.memory_space<vmem>>, vector<32x1xf32>
        %cst_21 = arith.constant dense<0xFF800000> : vector<32xf32>
        %36 = vector.multi_reduction <maximumf>, %34, %cst_21 [1] : vector<32x128xf32> to vector<32xf32>
        %37 = vector.shape_cast %36 : vector<32xf32> to vector<32x1xf32>
        %38 = arith.maximumf %35, %37 : vector<32x1xf32>
        %39 = arith.subf %35, %38 : vector<32x1xf32>
        %40 = math.exp %39 : vector<32x1xf32>
        %41 = vector.broadcast %38 : vector<32x1xf32> to vector<32x128xf32>
        %42 = arith.subf %34, %41 : vector<32x128xf32>
        %43 = math.exp %42 : vector<32x128xf32>
        %c0_22 = arith.constant 0 : index
        %c0_23 = arith.constant 0 : index
        %44 = vector.load %arg10[%c0_22, %c0_23] : memref<32x1xf32, #tpu.memory_space<vmem>>, vector<32x1xf32>
        %45 = arith.mulf %40, %44 : vector<32x1xf32>
        %cst_24 = arith.constant dense<0.000000e+00> : vector<32xf32>
        %46 = vector.multi_reduction <add>, %43, %cst_24 [1] : vector<32x128xf32> to vector<32xf32>
        %47 = vector.shape_cast %46 : vector<32xf32> to vector<32x1xf32>
        %48 = arith.addf %45, %47 : vector<32x1xf32>
        %c0_25 = arith.constant 0 : index
        %c0_26 = arith.constant 0 : index
        %49 = vector.load %arg10[%c0_25, %c0_26] : memref<32x1xf32, #tpu.memory_space<vmem>>, vector<32x1xf32>
        tpu.vector_store %arg10[%c0_25, %c0_26], %48 {strides = array<i32>} : memref<32x1xf32, #tpu.memory_space<vmem>>, vector<32x1xf32>,
        %c0_27 = arith.constant 0 : index
        %c0_28 = arith.constant 0 : index
        %50 = vector.load %arg11[%c0_27, %c0_28] : memref<32x32xf32, #tpu.memory_space<vmem>>, vector<32x32xf32>
        %51 = vector.broadcast %40 : vector<32x1xf32> to vector<32x32xf32>
        %52 = arith.mulf %51, %50 : vector<32x32xf32>
        %cst_29 = arith.constant dense<0.000000e+00> : vector<32x32xf32>
        %53 = tpu.matmul %43, %11, %cst_29 {dimension_numbers = #tpu.dot_dimension_numbers<[1], [0], [0], [1], [0, 0, 1, 1], [], []>} : vector<32x128xf32>, vector<128x32xf32>, vector<32x32xf32> -> vector<32x32xf32>
        %54 = arith.addf %52, %53 : vector<32x32xf32>
        %c0_30 = arith.constant 0 : index
        %c0_31 = arith.constant 0 : index
        %55 = vector.load %arg11[%c0_30, %c0_31] : memref<32x32xf32, #tpu.memory_space<vmem>>, vector<32x32xf32>
        tpu.vector_store %arg11[%c0_30, %c0_31], %54 {strides = array<i32>} : memref<32x32xf32, #tpu.memory_space<vmem>>, vector<32x32xf32>,
        %c0_32 = arith.constant 0 : index
        %c0_33 = arith.constant 0 : index
        %56 = vector.load %arg9[%c0_32, %c0_33] : memref<32x1xf32, #tpu.memory_space<vmem>>, vector<32x1xf32>
        tpu.vector_store %arg9[%c0_32, %c0_33], %38 {strides = array<i32>} : memref<32x1xf32, #tpu.memory_space<vmem>>, vector<32x1xf32>,
      } else {
      }
      %true = arith.constant true
      %19 = arith.xori %16, %true : i1
      %20 = arith.extui %19 : i1 to i32
      %c0_i32_13 = arith.constant 0 : i32
      %21 = arith.cmpi ne, %20, %c0_i32_13 : i32
      scf.if %21 {
        %c0_15 = arith.constant 0 : index
        %c0_16 = arith.constant 0 : index
        %26 = vector.load %arg9[%c0_15, %c0_16] : memref<32x1xf32, #tpu.memory_space<vmem>>, vector<32x1xf32>
        %cst_17 = arith.constant dense<0xFF800000> : vector<32xf32>
        %27 = vector.multi_reduction <maximumf>, %13, %cst_17 [1] : vector<32x128xf32> to vector<32xf32>
        %28 = vector.shape_cast %27 : vector<32xf32> to vector<32x1xf32>
        %29 = arith.maximumf %26, %28 : vector<32x1xf32>
        %30 = arith.subf %26, %29 : vector<32x1xf32>
        %31 = math.exp %30 : vector<32x1xf32>
        %32 = vector.broadcast %29 : vector<32x1xf32> to vector<32x128xf32>
        %33 = arith.subf %13, %32 : vector<32x128xf32>
        %34 = math.exp %33 : vector<32x128xf32>
        %c0_18 = arith.constant 0 : index
        %c0_19 = arith.constant 0 : index
        %35 = vector.load %arg10[%c0_18, %c0_19] : memref<32x1xf32, #tpu.memory_space<vmem>>, vector<32x1xf32>
        %36 = arith.mulf %31, %35 : vector<32x1xf32>
        %cst_20 = arith.constant dense<0.000000e+00> : vector<32xf32>
        %37 = vector.multi_reduction <add>, %34, %cst_20 [1] : vector<32x128xf32> to vector<32xf32>
        %38 = vector.shape_cast %37 : vector<32xf32> to vector<32x1xf32>
        %39 = arith.addf %36, %38 : vector<32x1xf32>
        %c0_21 = arith.constant 0 : index
        %c0_22 = arith.constant 0 : index
        %40 = vector.load %arg10[%c0_21, %c0_22] : memref<32x1xf32, #tpu.memory_space<vmem>>, vector<32x1xf32>
        tpu.vector_store %arg10[%c0_21, %c0_22], %39 {strides = array<i32>} : memref<32x1xf32, #tpu.memory_space<vmem>>, vector<32x1xf32>,
        %c0_23 = arith.constant 0 : index
        %c0_24 = arith.constant 0 : index
        %41 = vector.load %arg11[%c0_23, %c0_24] : memref<32x32xf32, #tpu.memory_space<vmem>>, vector<32x32xf32>
        %42 = vector.broadcast %31 : vector<32x1xf32> to vector<32x32xf32>
        %43 = arith.mulf %42, %41 : vector<32x32xf32>
        %cst_25 = arith.constant dense<0.000000e+00> : vector<32x32xf32>
        %44 = tpu.matmul %34, %11, %cst_25 {dimension_numbers = #tpu.dot_dimension_numbers<[1], [0], [0], [1], [0, 0, 1, 1], [], []>} : vector<32x128xf32>, vector<128x32xf32>, vector<32x32xf32> -> vector<32x32xf32>
        %45 = arith.addf %43, %44 : vector<32x32xf32>
        %c0_26 = arith.constant 0 : index
        %c0_27 = arith.constant 0 : index
        %46 = vector.load %arg11[%c0_26, %c0_27] : memref<32x32xf32, #tpu.memory_space<vmem>>, vector<32x32xf32>
        tpu.vector_store %arg11[%c0_26, %c0_27], %45 {strides = array<i32>} : memref<32x32xf32, #tpu.memory_space<vmem>>, vector<32x32xf32>,
        %c0_28 = arith.constant 0 : index
        %c0_29 = arith.constant 0 : index
        %47 = vector.load %arg9[%c0_28, %c0_29] : memref<32x1xf32, #tpu.memory_space<vmem>>, vector<32x1xf32>
        tpu.vector_store %arg9[%c0_28, %c0_29], %29 {strides = array<i32>} : memref<32x1xf32, #tpu.memory_space<vmem>>, vector<32x1xf32>,
      } else {
      }
      %c1_i32 = arith.constant 1 : i32
      %22 = arith.subi %0, %c1_i32 : i32
      %23 = arith.cmpi eq, %arg2, %22 : i32
      %24 = arith.extui %23 : i1 to i32
      %c0_i32_14 = arith.constant 0 : i32
      %25 = arith.cmpi ne, %24, %c0_i32_14 : i32
      scf.if %25 {
        %c0_15 = arith.constant 0 : index
        %c0_16 = arith.constant 0 : index
        %26 = vector.load %arg10[%c0_15, %c0_16] : memref<32x1xf32, #tpu.memory_space<vmem>>, vector<32x1xf32>
        %27 = tpu.reciprocal %26 : vector<32x1xf32> -> vector<32x1xf32>
        %c0_17 = arith.constant 0 : index
        %c0_18 = arith.constant 0 : index
        %28 = vector.load %arg11[%c0_17, %c0_18] : memref<32x32xf32, #tpu.memory_space<vmem>>, vector<32x32xf32>
        %29 = vector.broadcast %27 : vector<32x1xf32> to vector<32x32xf32>
        %30 = arith.mulf %28, %29 : vector<32x32xf32>
        %31 = vector.extract_strided_slice %30 {offsets = [0, 0], sizes = [8, 32], strides = [1, 1]} : vector<32x32xf32> to vector<8x32xf32>
        %32 = vector.extract_strided_slice %30 {offsets = [8, 0], sizes = [8, 32], strides = [1, 1]} : vector<32x32xf32> to vector<8x32xf32>
        %33 = vector.extract_strided_slice %30 {offsets = [16, 0], sizes = [8, 32], strides = [1, 1]} : vector<32x32xf32> to vector<8x32xf32>
        %34 = vector.extract_strided_slice %30 {offsets = [24, 0], sizes = [8, 32], strides = [1, 1]} : vector<32x32xf32> to vector<8x32xf32>
        %35 = tpu.concatenate %31, %32, %33, %34 in 1 : vector<8x32xf32>, vector<8x32xf32>, vector<8x32xf32>, vector<8x32xf32> -> vector<8x128xf32>
        %c0_19 = arith.constant 0 : index
        %c0_20 = arith.constant 0 : index
        %c0_21 = arith.constant 0 : index
        %36 = vector.load %arg8[%c0_19, %c0_20, %c0_21] : memref<1x8x128xf32, #tpu.memory_space<vmem>>, vector<1x8x128xf32>
        %37 = vector.shape_cast %36 : vector<1x8x128xf32> to vector<8x128xf32>
        %38 = vector.shape_cast %35 : vector<8x128xf32> to vector<1x8x128xf32>
        tpu.vector_store %arg8[%c0_19, %c0_20, %c0_21], %38 {strides = array<i32>} : memref<1x8x128xf32, #tpu.memory_space<vmem>>, vector<1x8x128xf32>,
      } else {
      }
    } else {
    }
    return
  }
  func.func @transform_0(%arg0: i32, %arg1: i32, %arg2: i32, %arg3: memref<2xi32, #tpu.memory_space<smem>>) -> (i32, i32) {
    %c0_i32 = arith.constant 0 : i32
    %c0_i32_0 = arith.constant 0 : i32
    %c0_i32_1 = arith.constant 0 : i32
    return %c0_i32, %c0_i32_0 : i32, i32
  }
  func.func @transform_1(%arg0: i32, %arg1: i32, %arg2: i32, %arg3: memref<2xi32, #tpu.memory_space<smem>>) -> (i32, i32, i32, i32) {
    %c0_i32 = arith.constant 0 : i32
    %c0_i32_0 = arith.constant 0 : i32
    %c0_i32_1 = arith.constant 0 : i32
    return %arg0, %arg1, %c0_i32, %c0_i32_0 : i32, i32, i32, i32
  }
  func.func @transform_2(%arg0: i32, %arg1: i32, %arg2: i32, %arg3: memref<2xi32, #tpu.memory_space<smem>>) -> (i32, i32, i32, i32) {
    %c0 = arith.constant 0 : index
    %0 = memref.load %arg3[%c0] : memref<2xi32, #tpu.memory_space<smem>>
    %c1_i32 = arith.constant 1 : i32
    %1 = arith.subi %0, %c1_i32 : i32
    %2 = arith.minsi %arg2, %1 : i32
    %c0_i32 = arith.constant 0 : i32
    %c0_i32_0 = arith.constant 0 : i32
    return %arg0, %arg1, %2, %c0_i32 : i32, i32, i32, i32
  }
  func.func @transform_3(%arg0: i32, %arg1: i32, %arg2: i32, %arg3: memref<2xi32, #tpu.memory_space<smem>>) -> (i32, i32, i32, i32) {
    %c0 = arith.constant 0 : index
    %0 = memref.load %arg3[%c0] : memref<2xi32, #tpu.memory_space<smem>>
    %c1_i32 = arith.constant 1 : i32
    %1 = arith.subi %0, %c1_i32 : i32
    %2 = arith.minsi %arg2, %1 : i32
    %c0_i32 = arith.constant 0 : i32
    %c0_i32_0 = arith.constant 0 : i32
    return %arg0, %arg1, %2, %c0_i32 : i32, i32, i32, i32
  }
  func.func @transform_4(%arg0: i32, %arg1: i32, %arg2: i32, %arg3: memref<2xi32, #tpu.memory_space<smem>>) -> (i32, i32, i32) {
    %c0_i32 = arith.constant 0 : i32
    %c0_i32_0 = arith.constant 0 : i32
    return %arg0, %c0_i32, %arg1 : i32, i32, i32
  }
}

</mosaic_0001>

<llo_original>
// kernel: tpu_custom_call.1
$region0: #{tpu_custom_call.1}
  #allocation0 [shape = 'u32[]', space=smem, size = 0x4, offset = 0x4, fixed_abs, tag = 'smem constant byte address 0x4 - core index']
  #allocation1 [shape = 'u32[144,128]{1,0:T(1,128)}', space=vmem, size = 0x12000, scoped, tag = 'internal scratch']
  #allocation2 [shape = 'f32[32,1]{1,0:T(8,128)}', space=vmem, size = 0x4000, scoped, tag = 'scratch operand']
  #allocation3 [shape = 'f32[32,1]{1,0:T(8,128)}', space=vmem, size = 0x4000, scoped, tag = 'scratch operand']
  #allocation4 [shape = 'f32[32,32]{1,0:T(8,128)}', space=vmem, size = 0x4000, scoped, tag = 'scratch operand']
  #allocation5 [shape = 'f32[32,32]{1,0:T(8,128)}', space=vmem, size = 0x4000, scoped, tag = 'scratch operand']
  #allocation6 [shape = 's32[1]{0}', space=sflag, size = 0x4, scoped, tag = 'scoped memory for tpu_custom_call.1']
  #allocation7 [shape = 'u8[512]{0}', space=smem, size = 0x200, scoped, tag = 'prefetched SMEM operand 0']
  %s0 = inlined_call_operand.vmem [shape: s32[2], index: 0, kind: input, shape index: {}]
  %s1 = inlined_call_operand.vmem [shape: s32[32,1], index: 1, kind: input, shape index: {}]
  %s2 = inlined_call_operand.vmem [shape: f32[2,2,32,32], index: 2, kind: input, shape index: {}]
  %s3 = inlined_call_operand.vmem [shape: f32[2,2,256,32], index: 3, kind: input, shape index: {}]
  %s4 = inlined_call_operand.vmem [shape: f32[2,2,256,32], index: 4, kind: input, shape index: {}]
  %s5 = inlined_call_operand.hbm [shape: f32[2,8,256], index: 5, kind: output, shape index: {}]
  %s6 = sld [smem:[#allocation0]]
  $region69: #{tpu_custom_call.1} parent=0
    _
  %s8 = ssub.s32 1, %s6
  %s9 = scalar_select 0, %s8, %s6
  %s10 = sshll.u32 %s0, 4
  %s11 = int_to_ptr.vmem [resolvable:$true] %s10
  %13 = dma.vmem_to_smem %s11, 16, [#allocation7], [#allocation6]
  %14 = dma.done [#allocation6], 16
  %15 = sfence
  $region1: #{tpu_custom_call.1} parent=0
    #allocation8 [shape = 'u8[8192]{0}', space=vmem, size = 0x2000, scoped, tag = 'output window, operand 0']
    #allocation9 [shape = 's32[2]{0}', space=sflag, size = 0x8, scoped, tag = 'scoped memory for tpu_custom_call.1']
    %16 = vsyncpa [#allocation9], 0
    %s17 = scalar_lea.sflag [#allocation9], 1
    %18 = vsyncpa %s17, 0
    loop: start=0, step=1, limit=10
    $region2: #{tpu_custom_call.1} parent=1 // loop_pre_header
      _
    $region3: #{tpu_custom_call.1} parent=1 // loop_header
      %s20 = sphi 0, %s24
      %p21 = scmp.ge.s32.totalorder %s20, 10
      %s27 = sphi 0, %s46
      %s28 = sphi 0, %s42
      %s29 = sphi 0, %s38
      %s30 = sphi 0, %s27
      %s31 = sphi 0, %s28
      %s32 = sphi 0, %s29
      %s33 = sphi 0, %s30
      %s34 = sphi 0, %s31
      %s35 = sphi 0, %s32
      %s47 = sphi 0, %s47
      %s49 = sphi 0, %s47
      %s50 = sphi 0, %s49
      %s64 = sphi 0, %s50
      %s72 = sphi 0, %s74
      %s75 = sphi 0, %s72
      %s76 = sphi 0, %s75
      %s92 = sphi 0, %s76
      %s110 = sphi 0, %s112
      %s113 = sphi 0, %s110
      %s114 = sphi 0, %s113
      %s130 = sphi 0, %s114
      %s148 = sphi 0, %s150
      %s151 = sphi 0, %s148
      %s152 = sphi 0, %s151
      %s168 = sphi 0, %s152
      %s176 = sphi 0, %s178
      %s179 = sphi 0, %s176
      %s180 = sphi 0, %s179
      %s196 = sphi 0, %s180
    $region4: #{tpu_custom_call.1} parent=1 // loop_header_branch
      %23 = sbr.rel (%p21) target = $region8
    $region5: #{tpu_custom_call.1} parent=1 // loop_body
      %s25 = ssub.s32 %s20, 1
      %s26 = ssub.s32 %s20, 2
      %s36 = sadd.s32 1, %s29
      %p37 = scmp.ge.s32.totalorder %s36, 2
      %s38 = scalar_select %p37, 0, %s36
      %s39 = sadd.s32 1, %s28
      %s40 = scalar_select %p37, %s39, %s28
      %p41 = scmp.ge.s32.totalorder %s40, 2
      %s42 = scalar_select %p41, 0, %s40
      %s43 = sadd.s32 1, %s27
      %s44 = scalar_select %p41, %s43, %s27
      %p45 = scmp.ge.s32.totalorder %s44, 2
      %s46 = scalar_select %p45, 0, %s44
      %s48 = sadd.s32 %s47, 1
      %p51 = scmp.eq.s32.totalorder %s20, 7
      %p52 = scmp.ne.s32.totalorder %s47, %s49
      %p53 = scmp.eq.s32.totalorder %s20, 0
      %p54 = por %p52, %p53
      %p55 = scmp.ne.s32.totalorder %s47, %s49
      %p56 = scmp.eq.s32.totalorder %s25, 7
      %p57 = por %p55, %p56
      %p58 = scmp.ne.s32.totalorder %s49, %s50
      %p59 = scmp.eq.s32.totalorder %s25, 0
      %p60 = por %p58, %p59
      %p61 = scmp.ne.s32.totalorder %s49, %s50
      %p62 = scmp.eq.s32.totalorder %s26, 7
      %p63 = por %p61, %p62
      %p65 = scmp.ne.s32.totalorder %s50, %s64
      %p66 = scmp.eq.s32.totalorder %s26, 0
      %p67 = por %p65, %p66
      %s68 = ssub.s32 %s27, %s46
      %s69 = ssub.s32 %s28, %s42
      %s70 = sor.u32 %s68, %s69
      %p71 = scmp.eq.s32.totalorder %s70, 0
      %s73 = sadd.s32 %s72, 1
      %s74 = scalar_select %p71, %s72, %s73
      %p77 = pneg %p71
      %p78 = scmp.eq.s32.totalorder %s20, 7
      %p79 = por %p77, %p78
      %p80 = scmp.ne.s32.totalorder %s72, %s75
      %p81 = scmp.eq.s32.totalorder %s20, 0
      %p82 = por %p80, %p81
      %p83 = scmp.ne.s32.totalorder %s72, %s75
      %p84 = scmp.eq.s32.totalorder %s25, 7
      %p85 = por %p83, %p84
      %p86 = scmp.ne.s32.totalorder %s75, %s76
      %p87 = scmp.eq.s32.totalorder %s25, 0
      %p88 = por %p86, %p87
      %p89 = scmp.ne.s32.totalorder %s75, %s76
      %p90 = scmp.eq.s32.totalorder %s26, 7
      %p91 = por %p89, %p90
      %p93 = scmp.ne.s32.totalorder %s76, %s92
      %p94 = scmp.eq.s32.totalorder %s26, 0
      %p95 = por %p93, %p94
      %s96 = sld [smem:[#allocation7]]
      %s97 = ssub.s32 %s96, 1
      %p98 = scmp.lt.s32.totalorder %s29, %s97
      %s99 = scalar_select %p98, %s29, %s97
      %s100 = sld [smem:[#allocation7]]
      %s101 = ssub.s32 %s100, 1
      %p102 = scmp.lt.s32.totalorder %s38, %s101
      %s103 = scalar_select %p102, %s38, %s101
      %s104 = ssub.s32 %s27, %s46
      %s105 = ssub.s32 %s28, %s42
      %s106 = sor.u32 %s104, %s105
      %s107 = ssub.s32 %s99, %s103
      %s108 = sor.u32 %s106, %s107
      %p109 = scmp.eq.s32.totalorder %s108, 0
      %s111 = sadd.s32 %s110, 1
      %s112 = scalar_select %p109, %s110, %s111
      %p115 = pneg %p109
      %p116 = scmp.eq.s32.totalorder %s20, 7
      %p117 = por %p115, %p116
      %p118 = scmp.ne.s32.totalorder %s110, %s113
      %p119 = scmp.eq.s32.totalorder %s20, 0
      %p120 = por %p118, %p119
      %p121 = scmp.ne.s32.totalorder %s110, %s113
      %p122 = scmp.eq.s32.totalorder %s25, 7
      %p123 = por %p121, %p122
      %p124 = scmp.ne.s32.totalorder %s113, %s114
      %p125 = scmp.eq.s32.totalorder %s25, 0
      %p126 = por %p124, %p125
      %p127 = scmp.ne.s32.totalorder %s113, %s114
      %p128 = scmp.eq.s32.totalorder %s26, 7
      %p129 = por %p127, %p128
      %p131 = scmp.ne.s32.totalorder %s114, %s130
      %p132 = scmp.eq.s32.totalorder %s26, 0
      %p133 = por %p131, %p132
      %s134 = sld [smem:[#allocation7]]
      %s135 = ssub.s32 %s134, 1
      %p136 = scmp.lt.s32.totalorder %s29, %s135
      %s137 = scalar_select %p136, %s29, %s135
      %s138 = sld [smem:[#allocation7]]
      %s139 = ssub.s32 %s138, 1
      %p140 = scmp.lt.s32.totalorder %s38, %s139
      %s141 = scalar_select %p140, %s38, %s139
      %s142 = ssub.s32 %s27, %s46
      %s143 = ssub.s32 %s28, %s42
      %s144 = sor.u32 %s142, %s143
      %s145 = ssub.s32 %s137, %s141
      %s146 = sor.u32 %s144, %s145
      %p147 = scmp.eq.s32.totalorder %s146, 0
      %s149 = sadd.s32 %s148, 1
      %s150 = scalar_select %p147, %s148, %s149
      %p153 = pneg %p147
      %p154 = scmp.eq.s32.totalorder %s20, 7
      %p155 = por %p153, %p154
      %p156 = scmp.ne.s32.totalorder %s148, %s151
      %p157 = scmp.eq.s32.totalorder %s20, 0
      %p158 = por %p156, %p157
      %p159 = scmp.ne.s32.totalorder %s148, %s151
      %p160 = scmp.eq.s32.totalorder %s25, 7
      %p161 = por %p159, %p160
      %p162 = scmp.ne.s32.totalorder %s151, %s152
      %p163 = scmp.eq.s32.totalorder %s25, 0
      %p164 = por %p162, %p163
      %p165 = scmp.ne.s32.totalorder %s151, %s152
      %p166 = scmp.eq.s32.totalorder %s26, 7
      %p167 = por %p165, %p166
      %p169 = scmp.ne.s32.totalorder %s152, %s168
      %p170 = scmp.eq.s32.totalorder %s26, 0
      %p171 = por %p169, %p170
      %s172 = ssub.s32 %s27, %s46
      %s173 = ssub.s32 %s28, %s42
      %s174 = sor.u32 %s172, %s173
      %p175 = scmp.eq.s32.totalorder %s174, 0
      %s177 = sadd.s32 %s176, 1
      %s178 = scalar_select %p175, %s176, %s177
      %p181 = pneg %p175
      %p182 = scmp.eq.s32.totalorder %s20, 7
      %p183 = por %p181, %p182
      %p184 = scmp.ne.s32.totalorder %s176, %s179
      %p185 = scmp.eq.s32.totalorder %s20, 0
      %p186 = por %p184, %p185
      %p187 = scmp.ne.s32.totalorder %s176, %s179
      %p188 = scmp.eq.s32.totalorder %s25, 7
      %p189 = por %p187, %p188
      %p190 = scmp.ne.s32.totalorder %s179, %s180
      %p191 = scmp.eq.s32.totalorder %s25, 0
      %p192 = por %p190, %p191
      %p193 = scmp.ne.s32.totalorder %s179, %s180
      %p194 = scmp.eq.s32.totalorder %s26, 7
      %p195 = por %p193, %p194
      %p197 = scmp.ne.s32.totalorder %s180, %s196
      %p198 = scmp.eq.s32.totalorder %s26, 0
      %p199 = por %p197, %p198
      %p200 = scmp.le.s32.totalorder 1, %s20
      %p201 = scmp.lt.s32.totalorder %s20, 9
      %p202 = pnand %p200, %p201
      %p203 = pneg %p202
      // Predicated region
      $region9: #{tpu_custom_call.1} parent=5 // pred_check
        _
      $region10: #{tpu_custom_call.1} parent=5 // pred_check_branch
        %205 = sbr.rel (%p202) target = $region12
      $region11: #{tpu_custom_call.1} parent=5 // pred_region
        %s206 = ssub.s32 %s20, 1
        // Predicated region
        $region13: #{tpu_custom_call.1} parent=11 // pred_check
          %p207 = pneg %p60
        $region14: #{tpu_custom_call.1} parent=11 // pred_check_branch
          %209 = sbr.rel (%p207) target = $region16
        $region15: #{tpu_custom_call.1} parent=11 // pred_region
          _
        $region16: #{tpu_custom_call.1} parent=11 // pred_fallthru
          _
      $region12: #{tpu_custom_call.1} parent=5 // pred_fallthru
        _
      %p210 = scmp.lt.s32.totalorder %s20, 8
      // Predicated region
      $region17: #{tpu_custom_call.1} parent=5 // pred_check
        %p211 = pneg %p210
      $region18: #{tpu_custom_call.1} parent=5 // pred_check_branch
        %213 = sbr.rel (%p211) target = $region20
      $region19: #{tpu_custom_call.1} parent=5 // pred_region
        // Predicated region
        $region21: #{tpu_custom_call.1} parent=19 // pred_check
          %p214 = pneg %p82
        $region22: #{tpu_custom_call.1} parent=19 // pred_check_branch
          %216 = sbr.rel (%p214) target = $region24
        $region23: #{tpu_custom_call.1} parent=19 // pred_region
          %p217 = scmp.lt.s32.totalorder %s27, 1
          %s218 = scalar_select %p217, %s27, 1
          %p219 = scmp.lt.s32.totalorder %s28, 1
          %s220 = scalar_select %p219, %s28, 1
          %s221 = smul.addr %s220, 4
          %s222 = smul.addr %s218, 8
          %s223 = sadd.s32 %s221, %s222
          %s224 = smul.addr %s223, 8
          %s225 = scalar_lea.vmem %s2, %s224
        $region24: #{tpu_custom_call.1} parent=19 // pred_fallthru
          _
        // Predicated region
        $region25: #{tpu_custom_call.1} parent=19 // pred_check
          %p226 = pneg %p120
        $region26: #{tpu_custom_call.1} parent=19 // pred_check_branch
          %228 = sbr.rel (%p226) target = $region28
        $region27: #{tpu_custom_call.1} parent=19 // pred_region
          %s229 = sld [smem:[#allocation7]]
          %s230 = ssub.s32 %s229, 1
          %p231 = scmp.lt.s32.totalorder %s29, %s230
          %s232 = scalar_select %p231, %s29, %s230
          %s233 = smul.u32 16, %s232
          %p234 = scmp.lt.s32.totalorder %s27, 1
          %s235 = scalar_select %p234, %s27, 1
          %p236 = scmp.lt.s32.totalorder %s28, 1
          %s237 = scalar_select %p236, %s28, 1
          %p238 = scmp.lt.s32.totalorder %s233, 31
          %s239 = scalar_select %p238, %s233, 31
          %s240 = smul.addr %s237, 32
          %s241 = sadd.s32 %s239, %s240
          %s242 = smul.addr %s235, 64
          %s243 = sadd.s32 %s241, %s242
          %s244 = smul.addr %s243, 8
          %s245 = scalar_lea.vmem %s3, %s244
          %s246 = sld [smem:[#allocation7]]
          %s247 = ssub.s32 %s246, 1
          %p248 = scmp.lt.s32.totalorder %s29, %s247
          %s249 = scalar_select %p248, %s29, %s247
          %s250 = smul.u32 16, %s249
        $region28: #{tpu_custom_call.1} parent=19 // pred_fallthru
          _
        // Predicated region
        $region29: #{tpu_custom_call.1} parent=19 // pred_check
          %p251 = pneg %p158
        $region30: #{tpu_custom_call.1} parent=19 // pred_check_branch
          %253 = sbr.rel (%p251) target = $region32
        $region31: #{tpu_custom_call.1} parent=19 // pred_region
          %s254 = sld [smem:[#allocation7]]
          %s255 = ssub.s32 %s254, 1
          %p256 = scmp.lt.s32.totalorder %s29, %s255
          %s257 = scalar_select %p256, %s29, %s255
          %s258 = smul.u32 16, %s257
          %p259 = scmp.lt.s32.totalorder %s27, 1
          %s260 = scalar_select %p259, %s27, 1
          %p261 = scmp.lt.s32.totalorder %s28, 1
          %s262 = scalar_select %p261, %s28, 1
          %p263 = scmp.lt.s32.totalorder %s258, 31
          %s264 = scalar_select %p263, %s258, 31
          %s265 = smul.addr %s262, 32
          %s266 = sadd.s32 %s264, %s265
          %s267 = smul.addr %s260, 64
          %s268 = sadd.s32 %s266, %s267
          %s269 = smul.addr %s268, 8
          %s270 = scalar_lea.vmem %s4, %s269
          %s271 = sld [smem:[#allocation7]]
          %s272 = ssub.s32 %s271, 1
          %p273 = scmp.lt.s32.totalorder %s29, %s272
          %s274 = scalar_select %p273, %s29, %s272
          %s275 = smul.u32 16, %s274
        $region32: #{tpu_custom_call.1} parent=19 // pred_fallthru
          _
      $region20: #{tpu_custom_call.1} parent=5 // pred_fallthru
        _
      %p276 = scmp.le.s32.totalorder 1, %s20
      %p277 = scmp.lt.s32.totalorder %s20, 9
      %p278 = pnand %p276, %p277
      %p279 = pneg %p278
      // Predicated region
      $region33: #{tpu_custom_call.1} parent=5 // pred_check
        _
      $region34: #{tpu_custom_call.1} parent=5 // pred_check_branch
        %281 = sbr.rel (%p278) target = $region36
      $region35: #{tpu_custom_call.1} parent=5 // pred_region
        %s282 = ssub.s32 %s20, 1
        %p283 = pneg %p60
        %p284 = pneg %p57
        %p285 = scmp.lt.s32.totalorder %s30, 1
        %s286 = scalar_select %p285, %s30, 1
        %p287 = scmp.lt.s32.totalorder %s31, 1
        %s288 = scalar_select %p287, %s31, 1
        %s289 = smul.addr %s288, 4
        %s290 = smul.addr %s286, 8
        %s291 = sadd.s32 %s289, %s290
        %s292 = smul.addr %s291, 8
        %s293 = scalar_lea.vmem %s2, %s292
        %p294 = pneg %p88
        %p295 = pneg %p85
        %s296 = sld [smem:[#allocation7]]
        %s297 = ssub.s32 %s296, 1
        %p298 = scmp.lt.s32.totalorder %s32, %s297
        %s299 = scalar_select %p298, %s32, %s297
        %s300 = smul.u32 16, %s299
        %p301 = scmp.lt.s32.totalorder %s30, 1
        %s302 = scalar_select %p301, %s30, 1
        %p303 = scmp.lt.s32.totalorder %s31, 1
        %s304 = scalar_select %p303, %s31, 1
        %p305 = scmp.lt.s32.totalorder %s300, 31
        %s306 = scalar_select %p305, %s300, 31
        %s307 = smul.addr %s304, 32
        %s308 = sadd.s32 %s306, %s307
        %s309 = smul.addr %s302, 64
        %s310 = sadd.s32 %s308, %s309
        %s311 = smul.addr %s310, 8
        %s312 = scalar_lea.vmem %s3, %s311
        %p313 = pneg %p126
        %p314 = pneg %p123
        %s315 = sld [smem:[#allocation7]]
        %s316 = ssub.s32 %s315, 1
        %p317 = scmp.lt.s32.totalorder %s32, %s316
        %s318 = scalar_select %p317, %s32, %s316
        %s319 = smul.u32 16, %s318
        %p320 = scmp.lt.s32.totalorder %s30, 1
        %s321 = scalar_select %p320, %s30, 1
        %p322 = scmp.lt.s32.totalorder %s31, 1
        %s323 = scalar_select %p322, %s31, 1
        %p324 = scmp.lt.s32.totalorder %s319, 31
        %s325 = scalar_select %p324, %s319, 31
        %s326 = smul.addr %s323, 32
        %s327 = sadd.s32 %s325, %s326
        %s328 = smul.addr %s321, 64
        %s329 = sadd.s32 %s327, %s328
        %s330 = smul.addr %s329, 8
        %s331 = scalar_lea.vmem %s4, %s330
        %p332 = pneg %p164
        %p333 = pneg %p161
        %p334 = pneg %p192
        %p335 = pneg %p189
        %s336 = sand.u32 %s179, 1
        %s337 = scalar_lea.sflag [#allocation9], %s336
        %s338 = sand.u32 %s179, 1
        %s339 = smul.addr %s338, 8
        %s340 = scalar_lea.vmem [#allocation8], %s339
        %p341 = scmp.lt.s32.totalorder %s30, 1
        %s342 = scalar_select %p341, %s30, 1
        %p343 = scmp.lt.s32.totalorder %s31, 1
        %s344 = scalar_select %p343, %s31, 1
        %s345 = smul.addr %s344, 4
        %s346 = smul.addr %s342, 8
        %s347 = sadd.s32 %s345, %s346
        %s348 = smul.addr %s347, 8
        %s349 = scalar_lea.vmem %s2, %s348
        %s350 = sld [smem:[#allocation7]]
        %s351 = ssub.s32 %s350, 1
        %p352 = scmp.lt.s32.totalorder %s32, %s351
        %s353 = scalar_select %p352, %s32, %s351
        %s354 = smul.u32 16, %s353
        %p355 = scmp.lt.s32.totalorder %s30, 1
        %s356 = scalar_select %p355, %s30, 1
        %p357 = scmp.lt.s32.totalorder %s31, 1
        %s358 = scalar_select %p357, %s31, 1
        %p359 = scmp.lt.s32.totalorder %s354, 31
        %s360 = scalar_select %p359, %s354, 31
        %s361 = smul.addr %s358, 32
        %s362 = sadd.s32 %s360, %s361
        %s363 = smul.addr %s356, 64
        %s364 = sadd.s32 %s362, %s363
        %s365 = smul.addr %s364, 8
        %s366 = scalar_lea.vmem %s3, %s365
        %s367 = sld [smem:[#allocation7]]
        %s368 = ssub.s32 %s367, 1
        %p369 = scmp.lt.s32.totalorder %s32, %s368
        %s370 = scalar_select %p369, %s32, %s368
        %s371 = smul.u32 16, %s370
        %s372 = sld [smem:[#allocation7]]
        %s373 = ssub.s32 %s372, 1
        %p374 = scmp.lt.s32.totalorder %s32, %s373
        %s375 = scalar_select %p374, %s32, %s373
        %s376 = smul.u32 16, %s375
        %p377 = scmp.lt.s32.totalorder %s30, 1
        %s378 = scalar_select %p377, %s30, 1
        %p379 = scmp.lt.s32.totalorder %s31, 1
        %s380 = scalar_select %p379, %s31, 1
        %p381 = scmp.lt.s32.totalorder %s376, 31
        %s382 = scalar_select %p381, %s376, 31
        %s383 = smul.addr %s380, 32
        %s384 = sadd.s32 %s382, %s383
        %s385 = smul.addr %s378, 64
        %s386 = sadd.s32 %s384, %s385
        %s387 = smul.addr %s386, 8
        %s388 = scalar_lea.vmem %s4, %s387
        %s389 = sld [smem:[#allocation7]]
        %s390 = ssub.s32 %s389, 1
        %p391 = scmp.lt.s32.totalorder %s32, %s390
        %s392 = scalar_select %p391, %s32, %s390
        %s393 = smul.u32 16, %s392
        %s394 = sld [smem:[#allocation7]]
        %s395 = sld [smem:[#allocation7 + $0x1]]
        %p396 = scmp.lt.s32.totalorder %s32, %s394
        // Predicated region
        $region37: #{tpu_custom_call.1} parent=35 // pred_check
          %p397 = pneg %p396
        $region38: #{tpu_custom_call.1} parent=35 // pred_check_branch
          %399 = sbr.rel (%p397) target = $region40
        $region39: #{tpu_custom_call.1} parent=35 // pred_region
          %p400 = scmp.eq.s32.totalorder %s32, 0
          // Predicated region
          $region41: #{tpu_custom_call.1} parent=39 // pred_check
            %p401 = pneg %p400
          $region42: #{tpu_custom_call.1} parent=39 // pred_check_branch
            %403 = sbr.rel (%p401) target = $region44
          $region43: #{tpu_custom_call.1} parent=39 // pred_region
            %vm404 = vcmask 7168
            %405 = vst.msk [vmem:[#allocation2] sm:$0xff] %vm404, -1e+30
            %406 = vst.msk [vmem:[#allocation2 + $0x8] sm:$0xff] %vm404, -1e+30
            %407 = vst.msk [vmem:[#allocation2 + $0x10] sm:$0xff] %vm404, -1e+30
            %408 = vst.msk [vmem:[#allocation2 + $0x18] sm:$0xff] %vm404, -1e+30
            %409 = vst.msk [vmem:[#allocation3] sm:$0xff] %vm404, 0.0
            %410 = vst.msk [vmem:[#allocation3 + $0x8] sm:$0xff] %vm404, 0.0
            %411 = vst.msk [vmem:[#allocation3 + $0x10] sm:$0xff] %vm404, 0.0
            %412 = vst.msk [vmem:[#allocation3 + $0x18] sm:$0xff] %vm404, 0.0
            %vm413 = vcmask 261120
            %414 = vst.msk [vmem:[#allocation4] sm:$0xff] %vm413, 0.0
            %415 = vst.msk [vmem:[#allocation4 + $0x8] sm:$0xff] %vm413, 0.0
            %416 = vst.msk [vmem:[#allocation4 + $0x10] sm:$0xff] %vm413, 0.0
            %417 = vst.msk [vmem:[#allocation4 + $0x18] sm:$0xff] %vm413, 0.0
            %v418 = vld [vmem:[%s349] sm:$0xff]
            %v419 = vld [vmem:[%s349 + $0x8] sm:$0xff]
            %v420 = vld [vmem:[%s349 + $0x10] sm:$0xff]
            %v421 = vld [vmem:[%s349 + $0x18] sm:$0xff]
            %v422 = vmul.f32 %v418, 0.17677669
            %v423 = vmul.f32 %v419, 0.17677669
            %v424 = vmul.f32 %v420, 0.17677669
            %v425 = vmul.f32 %v421, 0.17677669
            %426 = vst.msk [vmem:[#allocation5] sm:$0xff] %vm413, %v422
            %427 = vst.msk [vmem:[#allocation5 + $0x8] sm:$0xff] %vm413, %v423
            %428 = vst.msk [vmem:[#allocation5 + $0x10] sm:$0xff] %vm413, %v424
            %429 = vst.msk [vmem:[#allocation5 + $0x18] sm:$0xff] %vm413, %v425
          $region44: #{tpu_custom_call.1} parent=39 // pred_fallthru
            _
          %v430 = vld [vmem:[%s366] sm:$0xff]
          %v431 = vld [vmem:[%s366 + $0x8] sm:$0xff]
          %v432 = vld [vmem:[%s366 + $0x10] sm:$0xff]
          %v433 = vld [vmem:[%s366 + $0x18] sm:$0xff]
          %v434 = vld [vmem:[%s366 + $0x20] sm:$0xff]
          %v435 = vld [vmem:[%s366 + $0x28] sm:$0xff]
          %v436 = vld [vmem:[%s366 + $0x30] sm:$0xff]
          %v437 = vld [vmem:[%s366 + $0x38] sm:$0xff]
          %v438 = vld [vmem:[%s366 + $0x40] sm:$0xff]
          %v439 = vld [vmem:[%s366 + $0x48] sm:$0xff]
          %v440 = vld [vmem:[%s366 + $0x50] sm:$0xff]
          %v441 = vld [vmem:[%s366 + $0x58] sm:$0xff]
          %v442 = vld [vmem:[%s366 + $0x60] sm:$0xff]
          %v443 = vld [vmem:[%s366 + $0x68] sm:$0xff]
          %v444 = vld [vmem:[%s366 + $0x70] sm:$0xff]
          %v445 = vld [vmem:[%s366 + $0x78] sm:$0xff]
          %v446 = vld [vmem:[%s388] sm:$0xff]
          %v447 = vld [vmem:[%s388 + $0x8] sm:$0xff]
          %v448 = vld [vmem:[%s388 + $0x10] sm:$0xff]
          %v449 = vld [vmem:[%s388 + $0x18] sm:$0xff]
          %v450 = vld [vmem:[%s388 + $0x20] sm:$0xff]
          %v451 = vld [vmem:[%s388 + $0x28] sm:$0xff]
          %v452 = vld [vmem:[%s388 + $0x30] sm:$0xff]
          %v453 = vld [vmem:[%s388 + $0x38] sm:$0xff]
          %v454 = vld [vmem:[%s388 + $0x40] sm:$0xff]
          %v455 = vld [vmem:[%s388 + $0x48] sm:$0xff]
          %v456 = vld [vmem:[%s388 + $0x50] sm:$0xff]
          %v457 = vld [vmem:[%s388 + $0x58] sm:$0xff]
          %v458 = vld [vmem:[%s388 + $0x60] sm:$0xff]
          %v459 = vld [vmem:[%s388 + $0x68] sm:$0xff]
          %v460 = vld [vmem:[%s388 + $0x70] sm:$0xff]
          %v461 = vld [vmem:[%s388 + $0x78] sm:$0xff]
          %v462 = vld [vmem:[#allocation5] sm:$0xff]
          %v463 = vld [vmem:[#allocation5 + $0x8] sm:$0xff]
          %v464 = vld [vmem:[#allocation5 + $0x10] sm:$0xff]
          %v465 = vld [vmem:[#allocation5 + $0x18] sm:$0xff]
          %vm466 = vcmask 261120
          %v468 = vsel %vm466, %v462, 0
          %v471 = vsel %vm466, %v463, 0
          %v474 = vsel %vm466, %v464, 0
          %v477 = vsel %vm466, %v465, 0
          %v480 = vsel %vm466, %v430, 0
          %v483 = vsel %vm466, %v431, 0
          %v486 = vsel %vm466, %v432, 0
          %v489 = vsel %vm466, %v433, 0
          %v492 = vsel %vm466, %v434, 0
          %v495 = vsel %vm466, %v435, 0
          %v498 = vsel %vm466, %v436, 0
          %v501 = vsel %vm466, %v437, 0
          %v504 = vsel %vm466, %v438, 0
          %v507 = vsel %vm466, %v439, 0
          %v510 = vsel %vm466, %v440, 0
          %v513 = vsel %vm466, %v441, 0
          %v516 = vsel %vm466, %v442, 0
          %v519 = vsel %vm466, %v443, 0
          %v522 = vsel %vm466, %v444, 0
          %v525 = vsel %vm466, %v445, 0
          %527 = vmatprep.subr.mxu0 0.0
          %528 = vmatpush1.xpose.msra.mxu0 %v480
          %529 = vmatprep.subr.mxu0 0.0
          %530 = vmatpush1.xpose.msra.mxu0 %v483
          %531 = vmatprep.subr.mxu0 0.0
          %532 = vmatpush1.xpose.msra.mxu0 %v486
          %533 = vmatprep.subr.mxu0 0.0
          %534 = vmatpush1.xpose.msra.mxu0 %v489
          %535 = vmatprep.subr.mxu0 0.0
          %536 = vmatpush1.xpose.msra.mxu0 %v492
          %537 = vmatprep.subr.mxu0 0.0
          %538 = vmatpush1.xpose.msra.mxu0 %v495
          %539 = vmatprep.subr.mxu0 0.0
          %540 = vmatpush1.xpose.msra.mxu0 %v498
          %541 = vmatprep.subr.mxu0 0.0
          %542 = vmatpush1.xpose.msra.mxu0 %v501
          %543 = vmatprep.subr.mxu0 0.0
          %544 = vmatpush1.xpose.msra.mxu0 %v504
          %545 = vmatprep.subr.mxu0 0.0
          %546 = vmatpush1.xpose.msra.mxu0 %v507
          %547 = vmatprep.subr.mxu0 0.0
          %548 = vmatpush1.xpose.msra.mxu0 %v510
          %549 = vmatprep.subr.mxu0 0.0
          %550 = vmatpush1.xpose.msra.mxu0 %v513
          %551 = vmatprep.subr.mxu0 0.0
          %552 = vmatpush1.xpose.msra.mxu0 %v516
          %553 = vmatprep.subr.mxu0 0.0
          %554 = vmatpush1.xpose.msra.mxu0 %v519
          %555 = vmatprep.subr.mxu0 0.0
          %556 = vmatpush1.xpose.msra.mxu0 %v522
          %557 = vmatprep.subr.mxu0 0.0
          %558 = vmatpush1.xpose.msra.mxu0 %v525
          %559 = vmatprep.subr.mxu0 0.0
          %560 = vmatpush1.xpose.msra.mxu0 0.0
          %561 = vmatprep.subr.mxu0 0.0
          %562 = vmatpush1.xpose.msra.mxu0 0.0
          %563 = vmatprep.subr.mxu0 0.0
          %564 = vmatpush1.xpose.msra.mxu0 0.0
          %565 = vmatprep.subr.mxu0 0.0
          %566 = vmatpush1.xpose.msra.mxu0 0.0
          %567 = vmatprep.subr.mxu0 0.0
          %568 = vmatpush1.xpose.msra.mxu0 0.0
          %569 = vmatprep.subr.mxu0 0.0
          %570 = vmatpush1.xpose.msra.mxu0 0.0
          %571 = vmatprep.subr.mxu0 0.0
          %572 = vmatpush1.xpose.msra.mxu0 0.0
          %573 = vmatprep.subr.mxu0 0.0
          %574 = vmatpush1.xpose.msra.mxu0 0.0
          %575 = vmatprep.subr.mxu0 0.0
          %576 = vmatpush1.xpose.msra.mxu0 0.0
          %577 = vmatprep.subr.mxu0 0.0
          %578 = vmatpush1.xpose.msra.mxu0 0.0
          %579 = vmatprep.subr.mxu0 0.0
          %580 = vmatpush1.xpose.msra.mxu0 0.0
          %581 = vmatprep.subr.mxu0 0.0
          %582 = vmatpush1.xpose.msra.mxu0 0.0
          %583 = vmatprep.subr.mxu0 0.0
          %584 = vmatpush1.xpose.msra.mxu0 0.0
          %585 = vmatprep.subr.mxu0 0.0
          %586 = vmatpush1.xpose.msra.mxu0 0.0
          %587 = vmatprep.subr.mxu0 0.0
          %588 = vmatpush1.xpose.msra.mxu0 0.0
          %589 = vmatprep.subr.mxu0 0.0
          %590 = vmatpush1.xpose.msra.mxu0 0.0
          %591 = vmatprep.mubr.f32.mxu0 0.0
          %592 = vmatmul.mubr.f32.gmra.mrb[0].mxu0 %v468
          %v593 = vpop.f32.mrb[0].mxu0
          %v594 = vadd.f32 0.0, %v593
          %v595 = vpop.f32.mrb[0].mxu0
          %596 = vmatprep.mubr.f32.mxu0 0.0
          %597 = vmatmul.mubr.f32.gmra.mrb[0].mxu0 %v471
          %v598 = vpop.f32.mrb[0].mxu0
          %v599 = vadd.f32 0.0, %v598
          %v600 = vpop.f32.mrb[0].mxu0
          %601 = vmatprep.mubr.f32.mxu0 0.0
          %602 = vmatmul.mubr.f32.gmra.mrb[0].mxu0 %v474
          %v603 = vpop.f32.mrb[0].mxu0
          %v604 = vadd.f32 0.0, %v603
          %v605 = vpop.f32.mrb[0].mxu0
          %606 = vmatprep.mubr.f32.mxu0 0.0
          %607 = vmatmul.mubr.f32.gmra.mrb[0].mxu0 %v477
          %v608 = vpop.f32.mrb[0].mxu0
          %v609 = vadd.f32 0.0, %v608
          %v610 = vpop.f32.mrb[0].mxu0
          %611 = vdwg.mxu0
          %s612 = smul.u32 %s32, 128
          %s613 = sadd.s32 %s612, 127
          %p614 = scmp.gt.s32.totalorder %s613, %s395
          // Predicated region
          $region45: #{tpu_custom_call.1} parent=39 // pred_check
            %p615 = pneg %p614
          $region46: #{tpu_custom_call.1} parent=39 // pred_check_branch
            %617 = sbr.rel (%p615) target = $region48
          $region47: #{tpu_custom_call.1} parent=39 // pred_region
            %v618 = vlaneseq
            %v619 = vand.u32 %v618, 127
            %v620 = vstv %s612
            %v621 = vadd.s32 %v620, %v619
            %v622 = vld [vmem:[%s1] sm:$0xff]
            %v623 = vld [vmem:[%s1 + $0x8] sm:$0xff]
            %v624 = vld [vmem:[%s1 + $0x10] sm:$0xff]
            %v625 = vld [vmem:[%s1 + $0x18] sm:$0xff]
            %626 = vset.pattern.permute.xlu0 0
            %627 = vperm.xlu0 %626, %v622
            %v628 = vpop.permute.xlu0 %627
            %629 = vset.pattern.permute.xlu0 0
            %630 = vperm.xlu0 %629, %v623
            %v631 = vpop.permute.xlu0 %630
            %632 = vset.pattern.permute.xlu0 0
            %633 = vperm.xlu0 %632, %v624
            %v634 = vpop.permute.xlu0 %633
            %635 = vset.pattern.permute.xlu0 0
            %636 = vperm.xlu0 %635, %v625
            %v637 = vpop.permute.xlu0 %636
            %vm638 = vcmp.le.s32.totalorder %v621, %v628
            %vm639 = vcmp.le.s32.totalorder %v621, %v631
            %vm640 = vcmp.le.s32.totalorder %v621, %v634
            %vm641 = vcmp.le.s32.totalorder %v621, %v637
            %v642 = vsel %vm638, %v594, -inf
            %v643 = vsel %vm639, %v599, -inf
            %v644 = vsel %vm640, %v604, -inf
            %v645 = vsel %vm641, %v609, -inf
            %v646 = vld [vmem:[#allocation2] sm:$0xff]
            %v647 = vld [vmem:[#allocation2 + $0x8] sm:$0xff]
            %v648 = vld [vmem:[#allocation2 + $0x10] sm:$0xff]
            %v649 = vld [vmem:[#allocation2 + $0x18] sm:$0xff]
            %650 = vmax.xlane.f32.xlu0 %v642
            %v651 = vpop.xlane.xlu0 %650
            %652 = vmax.xlane.f32.xlu0 %v643
            %v653 = vpop.xlane.xlu0 %652
            %654 = vmax.xlane.f32.xlu0 %v644
            %v655 = vpop.xlane.xlu0 %654
            %656 = vmax.xlane.f32.xlu0 %v645
            %v657 = vpop.xlane.xlu0 %656
            %v658 = vmax.f32 %v646, %v651
            %v659 = vmax.f32 %v647, %v653
            %v660 = vmax.f32 %v648, %v655
            %v661 = vmax.f32 %v649, %v657
            %v662 = vsub.f32 %v646, %v658
            %v663 = vsub.f32 %v647, %v659
            %v664 = vsub.f32 %v648, %v660
            %v665 = vsub.f32 %v649, %v661
            %v666 = vmul.f32 %v662, 1.442695
            %v667 = vpow.pop %v666
            %v668 = vmul.f32 %v663, 1.442695
            %v669 = vpow.pop %v668
            %v670 = vmul.f32 %v664, 1.442695
            %v671 = vpow.pop %v670
            %v672 = vmul.f32 %v665, 1.442695
            %v673 = vpow.pop %v672
            %675 = vset.pattern.permute.xlu0 0
            %676 = vperm.xlu0 %675, %v658
            %v677 = vpop.permute.xlu0 %676
            %680 = vset.pattern.permute.xlu0 0
            %681 = vperm.xlu0 %680, %v659
            %v682 = vpop.permute.xlu0 %681
            %685 = vset.pattern.permute.xlu0 0
            %686 = vperm.xlu0 %685, %v660
            %v687 = vpop.permute.xlu0 %686
            %690 = vset.pattern.permute.xlu0 0
            %691 = vperm.xlu0 %690, %v661
            %v692 = vpop.permute.xlu0 %691
            %v694 = vsub.f32 %v642, %v677
            %v695 = vsub.f32 %v643, %v682
            %v696 = vsub.f32 %v644, %v687
            %v697 = vsub.f32 %v645, %v692
            %v698 = vmul.f32 %v694, 1.442695
            %v699 = vpow.pop %v698
            %v700 = vmul.f32 %v695, 1.442695
            %v701 = vpow.pop %v700
            %v702 = vmul.f32 %v696, 1.442695
            %v703 = vpow.pop %v702
            %v704 = vmul.f32 %v697, 1.442695
            %v705 = vpow.pop %v704
            %v706 = vld [vmem:[#allocation3] sm:$0xff]
            %v707 = vld [vmem:[#allocation3 + $0x8] sm:$0xff]
            %v708 = vld [vmem:[#allocation3 + $0x10] sm:$0xff]
            %v709 = vld [vmem:[#allocation3 + $0x18] sm:$0xff]
            %v710 = vmul.f32 %v667, %v706
            %v711 = vmul.f32 %v669, %v707
            %v712 = vmul.f32 %v671, %v708
            %v713 = vmul.f32 %v673, %v709
            %714 = vadd.xlane.f32.xlu0 %v699
            %v715 = vpop.xlane.xlu0 %714
            %716 = vadd.xlane.f32.xlu0 %v701
            %v717 = vpop.xlane.xlu0 %716
            %718 = vadd.xlane.f32.xlu0 %v703
            %v719 = vpop.xlane.xlu0 %718
            %720 = vadd.xlane.f32.xlu0 %v705
            %v721 = vpop.xlane.xlu0 %720
            %v722 = vadd.f32 %v710, %v715
            %v723 = vadd.f32 %v711, %v717
            %v724 = vadd.f32 %v712, %v719
            %v725 = vadd.f32 %v713, %v721
            %vm726 = vcmask 7168
            %727 = vst.msk [vmem:[#allocation3] sm:$0xff] %vm726, %v722
            %728 = vst.msk [vmem:[#allocation3 + $0x8] sm:$0xff] %vm726, %v723
            %729 = vst.msk [vmem:[#allocation3 + $0x10] sm:$0xff] %vm726, %v724
            %730 = vst.msk [vmem:[#allocation3 + $0x18] sm:$0xff] %vm726, %v725
            %v731 = vld [vmem:[#allocation4] sm:$0xff]
            %v732 = vld [vmem:[#allocation4 + $0x8] sm:$0xff]
            %v733 = vld [vmem:[#allocation4 + $0x10] sm:$0xff]
            %v734 = vld [vmem:[#allocation4 + $0x18] sm:$0xff]
            %736 = vset.pattern.permute.xlu0 0
            %737 = vperm.xlu0 %736, %v667
            %v738 = vpop.permute.xlu0 %737
            %741 = vset.pattern.permute.xlu0 0
            %742 = vperm.xlu0 %741, %v669
            %v743 = vpop.permute.xlu0 %742
            %746 = vset.pattern.permute.xlu0 0
            %747 = vperm.xlu0 %746, %v671
            %v748 = vpop.permute.xlu0 %747
            %751 = vset.pattern.permute.xlu0 0
            %752 = vperm.xlu0 %751, %v673
            %v753 = vpop.permute.xlu0 %752
            %v755 = vmul.f32 %v738, %v731
            %v756 = vmul.f32 %v743, %v732
            %v757 = vmul.f32 %v748, %v733
            %v758 = vmul.f32 %v753, %v734
            %759 = vmatprep.subr.mxu0 0.0
            %760 = vmatpush1.msra.mxu0 %v446
            %761 = vmatprep.subr.mxu0 0.0
            %762 = vmatpush1.msra.mxu0 %v447
            %763 = vmatprep.subr.mxu0 0.0
            %764 = vmatpush1.msra.mxu0 %v448
            %765 = vmatprep.subr.mxu0 0.0
            %766 = vmatpush1.msra.mxu0 %v449
            %767 = vmatprep.subr.mxu0 0.0
            %768 = vmatpush1.msra.mxu0 %v450
            %769 = vmatprep.subr.mxu0 0.0
            %770 = vmatpush1.msra.mxu0 %v451
            %771 = vmatprep.subr.mxu0 0.0
            %772 = vmatpush1.msra.mxu0 %v452
            %773 = vmatprep.subr.mxu0 0.0
            %774 = vmatpush1.msra.mxu0 %v453
            %775 = vmatprep.subr.mxu0 0.0
            %776 = vmatpush1.msra.mxu0 %v454
            %777 = vmatprep.subr.mxu0 0.0
            %778 = vmatpush1.msra.mxu0 %v455
            %779 = vmatprep.subr.mxu0 0.0
            %780 = vmatpush1.msra.mxu0 %v456
            %781 = vmatprep.subr.mxu0 0.0
            %782 = vmatpush1.msra.mxu0 %v457
            %783 = vmatprep.subr.mxu0 0.0
            %784 = vmatpush1.msra.mxu0 %v458
            %785 = vmatprep.subr.mxu0 0.0
            %786 = vmatpush1.msra.mxu0 %v459
            %787 = vmatprep.subr.mxu0 0.0
            %788 = vmatpush1.msra.mxu0 %v460
            %789 = vmatprep.subr.mxu0 0.0
            %790 = vmatpush1.msra.mxu0 %v461
            %791 = vmatprep.subr.mxu0 0.0
            %792 = vmatpush1.msra.mxu0 0.0
            %793 = vmatprep.subr.mxu0 0.0
            %794 = vmatpush1.msra.mxu0 0.0
            %795 = vmatprep.subr.mxu0 0.0
            %796 = vmatpush1.msra.mxu0 0.0
            %797 = vmatprep.subr.mxu0 0.0
            %798 = vmatpush1.msra.mxu0 0.0
            %799 = vmatprep.subr.mxu0 0.0
            %800 = vmatpush1.msra.mxu0 0.0
            %801 = vmatprep.subr.mxu0 0.0
            %802 = vmatpush1.msra.mxu0 0.0
            %803 = vmatprep.subr.mxu0 0.0
            %804 = vmatpush1.msra.mxu0 0.0
            %805 = vmatprep.subr.mxu0 0.0
            %806 = vmatpush1.msra.mxu0 0.0
            %807 = vmatprep.subr.mxu0 0.0
            %808 = vmatpush1.msra.mxu0 0.0
            %809 = vmatprep.subr.mxu0 0.0
            %810 = vmatpush1.msra.mxu0 0.0
            %811 = vmatprep.subr.mxu0 0.0
            %812 = vmatpush1.msra.mxu0 0.0
            %813 = vmatprep.subr.mxu0 0.0
            %814 = vmatpush1.msra.mxu0 0.0
            %815 = vmatprep.subr.mxu0 0.0
            %816 = vmatpush1.msra.mxu0 0.0
            %817 = vmatprep.subr.mxu0 0.0
            %818 = vmatpush1.msra.mxu0 0.0
            %819 = vmatprep.subr.mxu0 0.0
            %820 = vmatpush1.msra.mxu0 0.0
            %821 = vmatprep.subr.mxu0 0.0
            %822 = vmatpush1.msra.mxu0 0.0
            %823 = vmatprep.mubr.f32.mxu0 0.0
            %824 = vmatmul.mubr.f32.gmra.mrb[0].mxu0 %v699
            %v825 = vpop.f32.mrb[0].mxu0
            %v826 = vadd.f32 0.0, %v825
            %v827 = vpop.f32.mrb[0].mxu0
            %828 = vmatprep.mubr.f32.mxu0 0.0
            %829 = vmatmul.mubr.f32.gmra.mrb[0].mxu0 %v701
            %v830 = vpop.f32.mrb[0].mxu0
            %v831 = vadd.f32 0.0, %v830
            %v832 = vpop.f32.mrb[0].mxu0
            %833 = vmatprep.mubr.f32.mxu0 0.0
            %834 = vmatmul.mubr.f32.gmra.mrb[0].mxu0 %v703
            %v835 = vpop.f32.mrb[0].mxu0
            %v836 = vadd.f32 0.0, %v835
            %v837 = vpop.f32.mrb[0].mxu0
            %838 = vmatprep.mubr.f32.mxu0 0.0
            %839 = vmatmul.mubr.f32.gmra.mrb[0].mxu0 %v705
            %v840 = vpop.f32.mrb[0].mxu0
            %v841 = vadd.f32 0.0, %v840
            %v842 = vpop.f32.mrb[0].mxu0
            %843 = vdwg.mxu0
            %v844 = vadd.f32 %v755, %v826
            %v845 = vadd.f32 %v756, %v831
            %v846 = vadd.f32 %v757, %v836
            %v847 = vadd.f32 %v758, %v841
            %848 = vst.msk [vmem:[#allocation4] sm:$0xff] %vm466, %v844
            %849 = vst.msk [vmem:[#allocation4 + $0x8] sm:$0xff] %vm466, %v845
            %850 = vst.msk [vmem:[#allocation4 + $0x10] sm:$0xff] %vm466, %v846
            %851 = vst.msk [vmem:[#allocation4 + $0x18] sm:$0xff] %vm466, %v847
            %852 = vst.msk [vmem:[#allocation2] sm:$0xff] %vm726, %v658
            %853 = vst.msk [vmem:[#allocation2 + $0x8] sm:$0xff] %vm726, %v659
            %854 = vst.msk [vmem:[#allocation2 + $0x10] sm:$0xff] %vm726, %v660
            %855 = vst.msk [vmem:[#allocation2 + $0x18] sm:$0xff] %vm726, %v661
          $region48: #{tpu_custom_call.1} parent=39 // pred_fallthru
            _
          %p856 = scmp.le.s32.totalorder %s613, %s395
          // Predicated region
          $region49: #{tpu_custom_call.1} parent=39 // pred_check
            %p857 = pneg %p856
          $region50: #{tpu_custom_call.1} parent=39 // pred_check_branch
            %859 = sbr.rel (%p857) target = $region52
          $region51: #{tpu_custom_call.1} parent=39 // pred_region
            %v860 = vld [vmem:[#allocation2] sm:$0xff]
            %v861 = vld [vmem:[#allocation2 + $0x8] sm:$0xff]
            %v862 = vld [vmem:[#allocation2 + $0x10] sm:$0xff]
            %v863 = vld [vmem:[#allocation2 + $0x18] sm:$0xff]
            %864 = vmax.xlane.f32.xlu0 %v594
            %v865 = vpop.xlane.xlu0 %864
            %866 = vmax.xlane.f32.xlu0 %v599
            %v867 = vpop.xlane.xlu0 %866
            %868 = vmax.xlane.f32.xlu0 %v604
            %v869 = vpop.xlane.xlu0 %868
            %870 = vmax.xlane.f32.xlu0 %v609
            %v871 = vpop.xlane.xlu0 %870
            %v872 = vmax.f32 %v860, %v865
            %v873 = vmax.f32 %v861, %v867
            %v874 = vmax.f32 %v862, %v869
            %v875 = vmax.f32 %v863, %v871
            %v876 = vsub.f32 %v860, %v872
            %v877 = vsub.f32 %v861, %v873
            %v878 = vsub.f32 %v862, %v874
            %v879 = vsub.f32 %v863, %v875
            %v880 = vmul.f32 %v876, 1.442695
            %v881 = vpow.pop %v880
            %v882 = vmul.f32 %v877, 1.442695
            %v883 = vpow.pop %v882
            %v884 = vmul.f32 %v878, 1.442695
            %v885 = vpow.pop %v884
            %v886 = vmul.f32 %v879, 1.442695
            %v887 = vpow.pop %v886
            %889 = vset.pattern.permute.xlu0 0
            %890 = vperm.xlu0 %889, %v872
            %v891 = vpop.permute.xlu0 %890
            %894 = vset.pattern.permute.xlu0 0
            %895 = vperm.xlu0 %894, %v873
            %v896 = vpop.permute.xlu0 %895
            %899 = vset.pattern.permute.xlu0 0
            %900 = vperm.xlu0 %899, %v874
            %v901 = vpop.permute.xlu0 %900
            %904 = vset.pattern.permute.xlu0 0
            %905 = vperm.xlu0 %904, %v875
            %v906 = vpop.permute.xlu0 %905
            %v908 = vsub.f32 %v594, %v891
            %v909 = vsub.f32 %v599, %v896
            %v910 = vsub.f32 %v604, %v901
            %v911 = vsub.f32 %v609, %v906
            %v912 = vmul.f32 %v908, 1.442695
            %v913 = vpow.pop %v912
            %v914 = vmul.f32 %v909, 1.442695
            %v915 = vpow.pop %v914
            %v916 = vmul.f32 %v910, 1.442695
            %v917 = vpow.pop %v916
            %v918 = vmul.f32 %v911, 1.442695
            %v919 = vpow.pop %v918
            %v920 = vld [vmem:[#allocation3] sm:$0xff]
            %v921 = vld [vmem:[#allocation3 + $0x8] sm:$0xff]
            %v922 = vld [vmem:[#allocation3 + $0x10] sm:$0xff]
            %v923 = vld [vmem:[#allocation3 + $0x18] sm:$0xff]
            %v924 = vmul.f32 %v881, %v920
            %v925 = vmul.f32 %v883, %v921
            %v926 = vmul.f32 %v885, %v922
            %v927 = vmul.f32 %v887, %v923
            %928 = vadd.xlane.f32.xlu0 %v913
            %v929 = vpop.xlane.xlu0 %928
            %930 = vadd.xlane.f32.xlu0 %v915
            %v931 = vpop.xlane.xlu0 %930
            %932 = vadd.xlane.f32.xlu0 %v917
            %v933 = vpop.xlane.xlu0 %932
            %934 = vadd.xlane.f32.xlu0 %v919
            %v935 = vpop.xlane.xlu0 %934
            %v936 = vadd.f32 %v924, %v929
            %v937 = vadd.f32 %v925, %v931
            %v938 = vadd.f32 %v926, %v933
            %v939 = vadd.f32 %v927, %v935
            %vm940 = vcmask 7168
            %941 = vst.msk [vmem:[#allocation3] sm:$0xff] %vm940, %v936
            %942 = vst.msk [vmem:[#allocation3 + $0x8] sm:$0xff] %vm940, %v937
            %943 = vst.msk [vmem:[#allocation3 + $0x10] sm:$0xff] %vm940, %v938
            %944 = vst.msk [vmem:[#allocation3 + $0x18] sm:$0xff] %vm940, %v939
            %v945 = vld [vmem:[#allocation4] sm:$0xff]
            %v946 = vld [vmem:[#allocation4 + $0x8] sm:$0xff]
            %v947 = vld [vmem:[#allocation4 + $0x10] sm:$0xff]
            %v948 = vld [vmem:[#allocation4 + $0x18] sm:$0xff]
            %950 = vset.pattern.permute.xlu0 0
            %951 = vperm.xlu0 %950, %v881
            %v952 = vpop.permute.xlu0 %951
            %955 = vset.pattern.permute.xlu0 0
            %956 = vperm.xlu0 %955, %v883
            %v957 = vpop.permute.xlu0 %956
            %960 = vset.pattern.permute.xlu0 0
            %961 = vperm.xlu0 %960, %v885
            %v962 = vpop.permute.xlu0 %961
            %965 = vset.pattern.permute.xlu0 0
            %966 = vperm.xlu0 %965, %v887
            %v967 = vpop.permute.xlu0 %966
            %v969 = vmul.f32 %v952, %v945
            %v970 = vmul.f32 %v957, %v946
            %v971 = vmul.f32 %v962, %v947
            %v972 = vmul.f32 %v967, %v948
            %973 = vmatprep.subr.mxu0 0.0
            %974 = vmatpush1.msra.mxu0 %v446
            %975 = vmatprep.subr.mxu0 0.0
            %976 = vmatpush1.msra.mxu0 %v447
            %977 = vmatprep.subr.mxu0 0.0
            %978 = vmatpush1.msra.mxu0 %v448
            %979 = vmatprep.subr.mxu0 0.0
            %980 = vmatpush1.msra.mxu0 %v449
            %981 = vmatprep.subr.mxu0 0.0
            %982 = vmatpush1.msra.mxu0 %v450
            %983 = vmatprep.subr.mxu0 0.0
            %984 = vmatpush1.msra.mxu0 %v451
            %985 = vmatprep.subr.mxu0 0.0
            %986 = vmatpush1.msra.mxu0 %v452
            %987 = vmatprep.subr.mxu0 0.0
            %988 = vmatpush1.msra.mxu0 %v453
            %989 = vmatprep.subr.mxu0 0.0
            %990 = vmatpush1.msra.mxu0 %v454
            %991 = vmatprep.subr.mxu0 0.0
            %992 = vmatpush1.msra.mxu0 %v455
            %993 = vmatprep.subr.mxu0 0.0
            %994 = vmatpush1.msra.mxu0 %v456
            %995 = vmatprep.subr.mxu0 0.0
            %996 = vmatpush1.msra.mxu0 %v457
            %997 = vmatprep.subr.mxu0 0.0
            %998 = vmatpush1.msra.mxu0 %v458
            %999 = vmatprep.subr.mxu0 0.0
            %1000 = vmatpush1.msra.mxu0 %v459
            %1001 = vmatprep.subr.mxu0 0.0
            %1002 = vmatpush1.msra.mxu0 %v460
            %1003 = vmatprep.subr.mxu0 0.0
            %1004 = vmatpush1.msra.mxu0 %v461
            %1005 = vmatprep.subr.mxu0 0.0
            %1006 = vmatpush1.msra.mxu0 0.0
            %1007 = vmatprep.subr.mxu0 0.0
            %1008 = vmatpush1.msra.mxu0 0.0
            %1009 = vmatprep.subr.mxu0 0.0
            %1010 = vmatpush1.msra.mxu0 0.0
            %1011 = vmatprep.subr.mxu0 0.0
            %1012 = vmatpush1.msra.mxu0 0.0
            %1013 = vmatprep.subr.mxu0 0.0
            %1014 = vmatpush1.msra.mxu0 0.0
            %1015 = vmatprep.subr.mxu0 0.0
            %1016 = vmatpush1.msra.mxu0 0.0
            %1017 = vmatprep.subr.mxu0 0.0
            %1018 = vmatpush1.msra.mxu0 0.0
            %1019 = vmatprep.subr.mxu0 0.0
            %1020 = vmatpush1.msra.mxu0 0.0
            %1021 = vmatprep.subr.mxu0 0.0
            %1022 = vmatpush1.msra.mxu0 0.0
            %1023 = vmatprep.subr.mxu0 0.0
            %1024 = vmatpush1.msra.mxu0 0.0
            %1025 = vmatprep.subr.mxu0 0.0
            %1026 = vmatpush1.msra.mxu0 0.0
            %1027 = vmatprep.subr.mxu0 0.0
            %1028 = vmatpush1.msra.mxu0 0.0
            %1029 = vmatprep.subr.mxu0 0.0
            %1030 = vmatpush1.msra.mxu0 0.0
            %1031 = vmatprep.subr.mxu0 0.0
            %1032 = vmatpush1.msra.mxu0 0.0
            %1033 = vmatprep.subr.mxu0 0.0
            %1034 = vmatpush1.msra.mxu0 0.0
            %1035 = vmatprep.subr.mxu0 0.0
            %1036 = vmatpush1.msra.mxu0 0.0
            %1037 = vmatprep.mubr.f32.mxu0 0.0
            %1038 = vmatmul.mubr.f32.gmra.mrb[0].mxu0 %v913
            %v1039 = vpop.f32.mrb[0].mxu0
            %v1040 = vadd.f32 0.0, %v1039
            %v1041 = vpop.f32.mrb[0].mxu0
            %1042 = vmatprep.mubr.f32.mxu0 0.0
            %1043 = vmatmul.mubr.f32.gmra.mrb[0].mxu0 %v915
            %v1044 = vpop.f32.mrb[0].mxu0
            %v1045 = vadd.f32 0.0, %v1044
            %v1046 = vpop.f32.mrb[0].mxu0
            %1047 = vmatprep.mubr.f32.mxu0 0.0
            %1048 = vmatmul.mubr.f32.gmra.mrb[0].mxu0 %v917
            %v1049 = vpop.f32.mrb[0].mxu0
            %v1050 = vadd.f32 0.0, %v1049
            %v1051 = vpop.f32.mrb[0].mxu0
            %1052 = vmatprep.mubr.f32.mxu0 0.0
            %1053 = vmatmul.mubr.f32.gmra.mrb[0].mxu0 %v919
            %v1054 = vpop.f32.mrb[0].mxu0
            %v1055 = vadd.f32 0.0, %v1054
            %v1056 = vpop.f32.mrb[0].mxu0
            %1057 = vdwg.mxu0
            %v1058 = vadd.f32 %v969, %v1040
            %v1059 = vadd.f32 %v970, %v1045
            %v1060 = vadd.f32 %v971, %v1050
            %v1061 = vadd.f32 %v972, %v1055
            %1062 = vst.msk [vmem:[#allocation4] sm:$0xff] %vm466, %v1058
            %1063 = vst.msk [vmem:[#allocation4 + $0x8] sm:$0xff] %vm466, %v1059
            %1064 = vst.msk [vmem:[#allocation4 + $0x10] sm:$0xff] %vm466, %v1060
            %1065 = vst.msk [vmem:[#allocation4 + $0x18] sm:$0xff] %vm466, %v1061
            %1066 = vst.msk [vmem:[#allocation2] sm:$0xff] %vm940, %v872
            %1067 = vst.msk [vmem:[#allocation2 + $0x8] sm:$0xff] %vm940, %v873
            %1068 = vst.msk [vmem:[#allocation2 + $0x10] sm:$0xff] %vm940, %v874
            %1069 = vst.msk [vmem:[#allocation2 + $0x18] sm:$0xff] %vm940, %v875
          $region52: #{tpu_custom_call.1} parent=39 // pred_fallthru
            _
          %s1070 = ssub.s32 %s394, 1
          %p1071 = scmp.eq.s32.totalorder %s32, %s1070
          // Predicated region
          $region53: #{tpu_custom_call.1} parent=39 // pred_check
            %p1072 = pneg %p1071
          $region54: #{tpu_custom_call.1} parent=39 // pred_check_branch
            %1074 = sbr.rel (%p1072) target = $region56
          $region55: #{tpu_custom_call.1} parent=39 // pred_region
            %v1075 = vld [vmem:[#allocation3] sm:$0xff]
            %v1076 = vld [vmem:[#allocation3 + $0x8] sm:$0xff]
            %v1077 = vld [vmem:[#allocation3 + $0x10] sm:$0xff]
            %v1078 = vld [vmem:[#allocation3 + $0x18] sm:$0xff]
            %v1079 = vrcp.pop %v1075
            %v1080 = vrcp.pop %v1076
            %v1081 = vrcp.pop %v1077
            %v1082 = vrcp.pop %v1078
            %v1083 = vld [vmem:[#allocation4] sm:$0xff]
            %v1084 = vld [vmem:[#allocation4 + $0x8] sm:$0xff]
            %v1085 = vld [vmem:[#allocation4 + $0x10] sm:$0xff]
            %v1086 = vld [vmem:[#allocation4 + $0x18] sm:$0xff]
            %1088 = vset.pattern.permute.xlu0 0
            %1089 = vperm.xlu0 %1088, %v1079
            %v1090 = vpop.permute.xlu0 %1089
            %1093 = vset.pattern.permute.xlu0 0
            %1094 = vperm.xlu0 %1093, %v1080
            %v1095 = vpop.permute.xlu0 %1094
            %1098 = vset.pattern.permute.xlu0 0
            %1099 = vperm.xlu0 %1098, %v1081
            %v1100 = vpop.permute.xlu0 %1099
            %1103 = vset.pattern.permute.xlu0 0
            %1104 = vperm.xlu0 %1103, %v1082
            %v1105 = vpop.permute.xlu0 %1104
            %v1107 = vmul.f32 %v1083, %v1090
            %v1108 = vmul.f32 %v1084, %v1095
            %v1109 = vmul.f32 %v1085, %v1100
            %v1110 = vmul.f32 %v1086, %v1105
            %1112 = vrot.lane.b32.xlu0 %v1108, 32
            %v1113 = vpop.permute.xlu0 %1112
            %1116 = vrot.lane.b32.xlu0 %v1109, 64
            %v1117 = vpop.permute.xlu0 %1116
            %1120 = vrot.lane.b32.xlu0 %v1110, 96
            %v1121 = vpop.permute.xlu0 %1120
            %v1123 = vsel %vm466, %v1107, %v1113
            %vm1124 = vcmask 523264
            %v1125 = vsel %vm1124, %v1123, %v1117
            %vm1126 = vcmask 785408
            %v1127 = vsel %vm1126, %v1125, %v1121
            %1128 = vst [vmem:[%s340] sm:$0xff] %v1127
          $region56: #{tpu_custom_call.1} parent=39 // pred_fallthru
            _
        $region40: #{tpu_custom_call.1} parent=35 // pred_fallthru
          _
        %s1129 = sand.u32 %s179, 1
        %s1130 = scalar_lea.sflag [#allocation9], %s1129
        %s1131 = sand.u32 %s179, 1
        %s1132 = smul.addr %s1131, 8
        %s1133 = scalar_lea.vmem [#allocation8], %s1132
        // Predicated region
        $region57: #{tpu_custom_call.1} parent=35 // pred_check
          %p1134 = pneg %p189
        $region58: #{tpu_custom_call.1} parent=35 // pred_check_branch
          %1136 = sbr.rel (%p1134) target = $region60
        $region59: #{tpu_custom_call.1} parent=35 // pred_region
          %s1138 = ssub.s32 128, 128
          %1139 = vsyncadd %s1130, %s1138
          %s1140 = smul.addr %s30, 2
          %s1141 = sadd.s32 %s31, %s1140
          %s1142 = smul.addr %s1141, 128
          %s1143 = scalar_lea.hbm %s5, %s1142
          %s1145 = sshll.u32 %s1133, 4
          %s1146 = int_to_ptr.vmem [resolvable:$true] %s1145
          %1148 = dma.vmem_to_hbm [thread:$0]  %s1146, 128, %s1143, %s1130
        $region60: #{tpu_custom_call.1} parent=35 // pred_fallthru
          _
      $region36: #{tpu_custom_call.1} parent=5 // pred_fallthru
        _
      %p1149 = scmp.le.s32.totalorder 2, %s20
      // Predicated region
      $region61: #{tpu_custom_call.1} parent=5 // pred_check
        %p1150 = pneg %p1149
      $region62: #{tpu_custom_call.1} parent=5 // pred_check_branch
        %1152 = sbr.rel (%p1150) target = $region64
      $region63: #{tpu_custom_call.1} parent=5 // pred_region
        %s1153 = ssub.s32 %s20, 2
        // Predicated region
        $region65: #{tpu_custom_call.1} parent=63 // pred_check
          %p1154 = pneg %p195
        $region66: #{tpu_custom_call.1} parent=63 // pred_check_branch
          %1156 = sbr.rel (%p1154) target = $region68
        $region67: #{tpu_custom_call.1} parent=63 // pred_region
          %s1157 = sand.u32 %s180, 1
          %s1158 = scalar_lea.sflag [#allocation9], %s1157
          %s1159 = sand.u32 %s180, 1
          %s1160 = smul.addr %s1159, 8
          %s1161 = scalar_lea.vmem [#allocation8], %s1160
          %1162 = dma.done %s1158, 128
        $region68: #{tpu_custom_call.1} parent=63 // pred_fallthru
          _
      $region64: #{tpu_custom_call.1} parent=5 // pred_fallthru
        _
    $region6: #{tpu_custom_call.1} parent=1 // loop_footer
      %s24 = sadd.s32 1, %s20
    $region7: #{tpu_custom_call.1} parent=1 // loop_footer_branch
      %19 = sbr.rel target = $region3
    $region8: #{tpu_custom_call.1} parent=1 // loop_exit
      _
    %1163 = vsyncpa [#allocation9], 1
    %s1164 = scalar_lea.sflag [#allocation9], 1
    %1165 = vsyncpa %s1164, 1

</llo_original>
